<compile_context>
chip_gen: v7x
topology: tpu7x:2x2x1
jax: 0.10.0
libtpu: 0.0.40
codegen_flags: <defaults>
</compile_context>

<pallas_src>
import functools
import math

import jax
import jax.numpy as jnp
from jax.experimental import pallas as pl
from jax.experimental.pallas import tpu as pltpu


def encoder_layer_kernel(x_ref, wqkv_ref, bqkv_ref, wo_ref, bo_ref,
                         gamma_ref, beta_ref, out_ref,
                         *, n_heads, d_k, d_v, eps, mm_dtype):
    bt, s, d = x_ref.shape                      # (Bt, S, D) block
    nq = n_heads * d_k
    nk = n_heads * d_k

    x3 = x_ref[...].astype(jnp.float32)         # (Bt, S, D)
    x2 = x3.reshape(bt * s, d)                  # (Bt*S, D) — one tall matmul LHS

    # ---- fused Q/K/V projection: single wide MXU matmul ---------------------
    qkv = jnp.dot(x2.astype(mm_dtype), wqkv_ref[...].astype(mm_dtype),
                  preferred_element_type=jnp.float32) + bqkv_ref[...]
    qkv = qkv.reshape(bt, s, qkv.shape[-1])     # (Bt, S, H*dk + H*dk + H*dv)

    wo = wo_ref[...].astype(mm_dtype)           # (H*dv, D), loaded once
    scale = 1.0 / math.sqrt(s)                  # reference scales by 1/sqrt(sen_len)

    # ---- attention: batched over Bt, heads statically unrolled --------------
    # Output projection is accumulated per head: concat(ctx_h) @ Wo
    #   == sum_h ctx_h @ Wo[h*dv:(h+1)*dv]  (no lane-axis concatenate needed).
    acc = jnp.zeros((bt * s, d), jnp.float32)
    for h in range(n_heads):
        qh = qkv[:, :, h * d_k:(h + 1) * d_k]                       # (Bt, S, dk)
        kh = qkv[:, :, nq + h * d_k: nq + (h + 1) * d_k]            # (Bt, S, dk)
        vh = qkv[:, :, nq + nk + h * d_v: nq + nk + (h + 1) * d_v]  # (Bt, S, dv)

        # scores: contract last dims of both operands (no explicit kh.T).
        scores = jnp.einsum("bqd,bkd->bqk",
                            qh.astype(mm_dtype), kh.astype(mm_dtype),
                            preferred_element_type=jnp.float32) * scale  # (Bt,S,S)

        m = jnp.max(scores, axis=-1, keepdims=True)
        p = jnp.exp(scores - m)
        denom = jnp.sum(p, axis=-1, keepdims=True)
        attn = p * pl.reciprocal(denom, approx=True)                # EUP reciprocal

        ctx = jnp.einsum("bqk,bkd->bqd",
                         attn.astype(mm_dtype), vh.astype(mm_dtype),
                         preferred_element_type=jnp.float32)        # (Bt, S, dv)
        ctx2 = ctx.reshape(bt * s, d_v)
        acc = acc + jnp.dot(ctx2.astype(mm_dtype), wo[h * d_v:(h + 1) * d_v, :],
                            preferred_element_type=jnp.float32)     # (Bt*S, D)

    # ---- output bias + residual + LayerNorm (single-pass mean/var) ----------
    y = acc + bo_ref[...] + x2
    mean = jnp.mean(y, axis=-1, keepdims=True)
    mean_sq = jnp.mean(y * y, axis=-1, keepdims=True)
    var = mean_sq - mean * mean
    y_norm = (y - mean) * jax.lax.rsqrt(var + eps)
    res = y_norm * gamma_ref[...] + beta_ref[...]
    out_ref[...] = res.reshape(bt, s, d).astype(out_ref.dtype)


def encoder_layer(x, params, *, n_heads, d_k, d_v, eps=1e-5,
                  block_b=1, mm_dtype=jnp.float32):
    B, S, D = x.shape
    assert B % block_b == 0, "block_b must divide the batch size"
    wq, bq, wk, bk, wv, bv, wo, bo, gamma, beta = params

    # Host-side fusion of the three projection weights/biases -> one matmul.
    wqkv = jnp.concatenate([wq, wk, wv], axis=1)   # (D, H*dk + H*dk + H*dv)
    bqkv = jnp.concatenate([bq, bk, bv], axis=1)   # (1, H*dk + H*dk + H*dv)

    kernel = functools.partial(encoder_layer_kernel, n_heads=n_heads,
                               d_k=d_k, d_v=d_v, eps=eps, mm_dtype=mm_dtype)

    full2d = lambda a: pl.BlockSpec(a.shape, lambda b: (0, 0))

    return pl.pallas_call(
        kernel,
        out_shape=jax.ShapeDtypeStruct((B, S, D), x.dtype),
        grid_spec=pltpu.PrefetchScalarGridSpec(
            num_scalar_prefetch=0,
            grid=(B // block_b,),
            in_specs=[
                pl.BlockSpec((block_b, S, D), lambda b: (b, 0, 0)),   # x
                full2d(wqkv), full2d(bqkv),
                full2d(wo), full2d(bo),
                full2d(gamma), full2d(beta),
            ],
            out_specs=pl.BlockSpec((block_b, S, D), lambda b: (b, 0, 0)),
        ),
        # Batch axis is independent -> "parallel" (megacore sharding on v7x).
        # For large-S configs also raise vmem_limit_bytes here.
        compiler_params=pltpu.CompilerParams(
            dimension_semantics=("parallel",)),
    )(x, wqkv, bqkv, wo, bo, gamma, beta)


def encoder_layer_ref(x, params, *, n_heads, d_k, d_v, eps=1e-5):
    """Pure-JAX reference mirroring the PyTorch forward (dropout p=0, no mask)."""
    wq, bq, wk, bk, wv, bv, wo, bo, gamma, beta = params
    B, S, D = x.shape
    q = (x @ wq + bq[0]).reshape(B, S, n_heads, d_k).transpose(0, 2, 1, 3)
    k = (x @ wk + bk[0]).reshape(B, S, n_heads, d_k).transpose(0, 2, 1, 3)
    v = (x @ wv + bv[0]).reshape(B, S, n_heads, d_v).transpose(0, 2, 1, 3)
    scores = jnp.einsum("bhqd,bhkd->bhqk", q, k) / jnp.sqrt(jnp.float32(S))
    attn = jax.nn.softmax(scores, axis=-1)
    ctx = jnp.einsum("bhqk,bhkd->bhqd", attn, v)
    ctx = ctx.transpose(0, 2, 1, 3).reshape(B, S, n_heads * d_v)
    out = ctx @ wo + bo[0]
    y = out + x
    mean = jnp.mean(y, axis=-1, keepdims=True)
    var = jnp.mean((y - mean) ** 2, axis=-1, keepdims=True)
    return ((y - mean) / jnp.sqrt(var + eps)) * gamma[0] + beta[0]


def init_params(key, d_model, d_k, d_v, n_heads):
    ks = jax.random.split(key, 8)
    s = 0.05
    wq = s * jax.random.normal(ks[0], (d_model, d_k * n_heads), jnp.float32)
    bq = s * jax.random.normal(ks[1], (1, d_k * n_heads), jnp.float32)
    wk = s * jax.random.normal(ks[2], (d_model, d_k * n_heads), jnp.float32)
    bk = s * jax.random.normal(ks[3], (1, d_k * n_heads), jnp.float32)
    wv = s * jax.random.normal(ks[4], (d_model, d_v * n_heads), jnp.float32)
    bv = s * jax.random.normal(ks[5], (1, d_v * n_heads), jnp.float32)
    wo = s * jax.random.normal(ks[6], (d_v * n_heads, d_model), jnp.float32)
    bo = s * jax.random.normal(ks[7], (1, d_model), jnp.float32)
    gamma = jnp.ones((1, d_model), jnp.float32)   # LayerNorm default init
    beta = jnp.zeros((1, d_model), jnp.float32)
    return (wq, bq, wk, bk, wv, bv, wo, bo, gamma, beta)


if __name__ == "__main__":
    B, S = 2, 8
    d_model, d_k, d_v, n_heads = 32, 16, 16, 4

    key = jax.random.PRNGKey(0)
    kx, kp = jax.random.split(key)
    x = jax.random.normal(kx, (B, S, d_model), jnp.float32)
    params = init_params(kp, d_model, d_k, d_v, n_heads)

    ref = encoder_layer_ref(x, params, n_heads=n_heads, d_k=d_k, d_v=d_v)

    # 1) f32 MXU inputs, one batch element per grid step.
    out = jax.block_until_ready(
        encoder_layer(x, params, n_heads=n_heads, d_k=d_k, d_v=d_v, block_b=1))
    assert out.shape == (B, S, d_model)
    # tolerance accounts for the EUP approximate reciprocal in the softmax
    assert jnp.allclose(out, ref, atol=2e-3, rtol=2e-3), "f32 mismatch vs reference"

    # 2) coarsened grid: both batch elements in one grid step.
    out2 = jax.block_until_ready(
        encoder_layer(x, params, n_heads=n_heads, d_k=d_k, d_v=d_v, block_b=2))
    assert jnp.allclose(out2, ref, atol=2e-3, rtol=2e-3), "block_b=2 mismatch"

    # 3) bf16 MXU inputs with f32 accumulation (softmax / LayerNorm stay f32).
    out3 = jax.block_until_ready(
        encoder_layer(x, params, n_heads=n_heads, d_k=d_k, d_v=d_v,
                      block_b=2, mm_dtype=jnp.bfloat16))
    assert jnp.allclose(out3, ref, atol=5e-2, rtol=5e-2), "bf16 mismatch"

    print("KERNEL_OK")
</pallas_src>

<mosaic_0001>
module attributes {stable_mosaic.version = 11 : i64} {
  func.func @encoder_layer_kernel(%arg0: i32, %arg1: memref<1x8x32xf32, #tpu.memory_space<vmem>>, %arg2: memref<32x192xf32, #tpu.memory_space<vmem>>, %arg3: memref<1x192xf32, #tpu.memory_space<vmem>>, %arg4: memref<64x32xf32, #tpu.memory_space<vmem>>, %arg5: memref<1x32xf32, #tpu.memory_space<vmem>>, %arg6: memref<1x32xf32, #tpu.memory_space<vmem>>, %arg7: memref<1x32xf32, #tpu.memory_space<vmem>>, %arg8: memref<1x8x32xf32, #tpu.memory_space<vmem>>) attributes {dimension_semantics = [#tpu.dimension_semantics<parallel>], iteration_bounds = array<i64: 2>, scalar_prefetch = 0 : i64, scratch_operands = 0 : i64, tpu.core_type = #tpu.core_type<tc>, window_params = [{transform_indices = @transform_0, window_bounds = array<i64: 1, 8, 32>}, {pipeline_mode = #tpu.pipeline_mode<synchronous>, transform_indices = @transform_1, window_bounds = array<i64: 32, 192>}, {pipeline_mode = #tpu.pipeline_mode<synchronous>, transform_indices = @transform_2, window_bounds = array<i64: 1, 192>}, {pipeline_mode = #tpu.pipeline_mode<synchronous>, transform_indices = @transform_3, window_bounds = array<i64: 64, 32>}, {pipeline_mode = #tpu.pipeline_mode<synchronous>, transform_indices = @transform_4, window_bounds = array<i64: 1, 32>}, {pipeline_mode = #tpu.pipeline_mode<synchronous>, transform_indices = @transform_5, window_bounds = array<i64: 1, 32>}, {pipeline_mode = #tpu.pipeline_mode<synchronous>, transform_indices = @transform_6, window_bounds = array<i64: 1, 32>}, {transform_indices = @transform_7, window_bounds = array<i64: 1, 8, 32>}]} {
    %c0 = arith.constant 0 : index
    %c0_0 = arith.constant 0 : index
    %c0_1 = arith.constant 0 : index
    %0 = vector.load %arg1[%c0, %c0_0, %c0_1] : memref<1x8x32xf32, #tpu.memory_space<vmem>>, vector<1x8x32xf32>
    %1 = vector.shape_cast %0 : vector<1x8x32xf32> to vector<8x32xf32>
    %c0_2 = arith.constant 0 : index
    %c0_3 = arith.constant 0 : index
    %2 = vector.load %arg2[%c0_2, %c0_3] : memref<32x192xf32, #tpu.memory_space<vmem>>, vector<32x192xf32>
    %cst = arith.constant dense<0.000000e+00> : vector<8x192xf32>
    %3 = tpu.matmul %1, %2, %cst {dimension_numbers = #tpu.dot_dimension_numbers<[1], [0], [0], [1], [0, 0, 1, 1], [], []>} : vector<8x32xf32>, vector<32x192xf32>, vector<8x192xf32> -> vector<8x192xf32>
    %c0_4 = arith.constant 0 : index
    %c0_5 = arith.constant 0 : index
    %4 = vector.load %arg3[%c0_4, %c0_5] : memref<1x192xf32, #tpu.memory_space<vmem>>, vector<1x192xf32>
    %5 = vector.broadcast %4 : vector<1x192xf32> to vector<8x192xf32>
    %6 = arith.addf %3, %5 : vector<8x192xf32>
    %7 = vector.shape_cast %6 : vector<8x192xf32> to vector<1x8x192xf32>
    %c0_6 = arith.constant 0 : index
    %c0_7 = arith.constant 0 : index
    %8 = vector.load %arg4[%c0_6, %c0_7] : memref<64x32xf32, #tpu.memory_space<vmem>>, vector<64x32xf32>
    %cst_8 = arith.constant 0.000000e+00 : f32
    %9 = vector.broadcast %cst_8 : f32 to vector<8x32xf32>
    %10 = vector.extract_strided_slice %7 {offsets = [0, 0, 0], sizes = [1, 8, 16], strides = [1, 1, 1]} : vector<1x8x192xf32> to vector<1x8x16xf32>
    %11 = vector.extract_strided_slice %7 {offsets = [0, 0, 64], sizes = [1, 8, 16], strides = [1, 1, 1]} : vector<1x8x192xf32> to vector<1x8x16xf32>
    %12 = vector.extract_strided_slice %7 {offsets = [0, 0, 128], sizes = [1, 8, 16], strides = [1, 1, 1]} : vector<1x8x192xf32> to vector<1x8x16xf32>
    "tpu.trace_start"() <{level = 10 : i32, message = "bqd,bkd->bqk"}> : () -> ()
    %cst_9 = arith.constant dense<0.000000e+00> : vector<1x8x8xf32>
    %13 = tpu.matmul %10, %11, %cst_9 {dimension_numbers = #tpu.dot_dimension_numbers<[2], [2], [1], [1], [0, 0, 0, 1, 1, 1], [0], [0]>} : vector<1x8x16xf32>, vector<1x8x16xf32>, vector<1x8x8xf32> -> vector<1x8x8xf32>
    "tpu.trace_stop"() : () -> ()
    %cst_10 = arith.constant 0.353553385 : f32
    %14 = vector.broadcast %cst_10 : f32 to vector<1x8x8xf32>
    %15 = arith.mulf %13, %14 : vector<1x8x8xf32>
    %cst_11 = arith.constant dense<0xFF800000> : vector<1x8xf32>
    %16 = vector.multi_reduction <maximumf>, %15, %cst_11 [2] : vector<1x8x8xf32> to vector<1x8xf32>
    %17 = vector.shape_cast %16 : vector<1x8xf32> to vector<1x8x1xf32>
    %18 = vector.broadcast %17 : vector<1x8x1xf32> to vector<1x8x8xf32>
    %19 = arith.subf %15, %18 : vector<1x8x8xf32>
    %20 = math.exp %19 : vector<1x8x8xf32>
    %cst_12 = arith.constant dense<0.000000e+00> : vector<1x8xf32>
    %21 = vector.multi_reduction <add>, %20, %cst_12 [2] : vector<1x8x8xf32> to vector<1x8xf32>
    %22 = vector.shape_cast %21 : vector<1x8xf32> to vector<1x8x1xf32>
    %23 = tpu.reciprocal %22 {approx = true} : vector<1x8x1xf32> -> vector<1x8x1xf32>
    %24 = vector.broadcast %23 : vector<1x8x1xf32> to vector<1x8x8xf32>
    %25 = arith.mulf %20, %24 : vector<1x8x8xf32>
    "tpu.trace_start"() <{level = 10 : i32, message = "bqk,bkd->bqd"}> : () -> ()
    %cst_13 = arith.constant dense<0.000000e+00> : vector<1x8x16xf32>
    %26 = tpu.matmul %25, %12, %cst_13 {dimension_numbers = #tpu.dot_dimension_numbers<[2], [1], [1], [2], [0, 0, 0, 1, 1, 2], [0], [0]>} : vector<1x8x8xf32>, vector<1x8x16xf32>, vector<1x8x16xf32> -> vector<1x8x16xf32>
    "tpu.trace_stop"() : () -> ()
    %27 = vector.shape_cast %26 : vector<1x8x16xf32> to vector<8x16xf32>
    %28 = vector.extract_strided_slice %8 {offsets = [0, 0], sizes = [16, 32], strides = [1, 1]} : vector<64x32xf32> to vector<16x32xf32>
    %cst_14 = arith.constant dense<0.000000e+00> : vector<8x32xf32>
    %29 = tpu.matmul %27, %28, %cst_14 {dimension_numbers = #tpu.dot_dimension_numbers<[1], [0], [0], [1], [0, 0, 1, 1], [], []>} : vector<8x16xf32>, vector<16x32xf32>, vector<8x32xf32> -> vector<8x32xf32>
    %30 = arith.addf %9, %29 : vector<8x32xf32>
    %31 = vector.extract_strided_slice %7 {offsets = [0, 0, 16], sizes = [1, 8, 16], strides = [1, 1, 1]} : vector<1x8x192xf32> to vector<1x8x16xf32>
    %32 = vector.extract_strided_slice %7 {offsets = [0, 0, 80], sizes = [1, 8, 16], strides = [1, 1, 1]} : vector<1x8x192xf32> to vector<1x8x16xf32>
    %33 = vector.extract_strided_slice %7 {offsets = [0, 0, 144], sizes = [1, 8, 16], strides = [1, 1, 1]} : vector<1x8x192xf32> to vector<1x8x16xf32>
    "tpu.trace_start"() <{level = 10 : i32, message = "bqd,bkd->bqk"}> : () -> ()
    %cst_15 = arith.constant dense<0.000000e+00> : vector<1x8x8xf32>
    %34 = tpu.matmul %31, %32, %cst_15 {dimension_numbers = #tpu.dot_dimension_numbers<[2], [2], [1], [1], [0, 0, 0, 1, 1, 1], [0], [0]>} : vector<1x8x16xf32>, vector<1x8x16xf32>, vector<1x8x8xf32> -> vector<1x8x8xf32>
    "tpu.trace_stop"() : () -> ()
    %cst_16 = arith.constant 0.353553385 : f32
    %35 = vector.broadcast %cst_16 : f32 to vector<1x8x8xf32>
    %36 = arith.mulf %34, %35 : vector<1x8x8xf32>
    %cst_17 = arith.constant dense<0xFF800000> : vector<1x8xf32>
    %37 = vector.multi_reduction <maximumf>, %36, %cst_17 [2] : vector<1x8x8xf32> to vector<1x8xf32>
    %38 = vector.shape_cast %37 : vector<1x8xf32> to vector<1x8x1xf32>
    %39 = vector.broadcast %38 : vector<1x8x1xf32> to vector<1x8x8xf32>
    %40 = arith.subf %36, %39 : vector<1x8x8xf32>
    %41 = math.exp %40 : vector<1x8x8xf32>
    %cst_18 = arith.constant dense<0.000000e+00> : vector<1x8xf32>
    %42 = vector.multi_reduction <add>, %41, %cst_18 [2] : vector<1x8x8xf32> to vector<1x8xf32>
    %43 = vector.shape_cast %42 : vector<1x8xf32> to vector<1x8x1xf32>
    %44 = tpu.reciprocal %43 {approx = true} : vector<1x8x1xf32> -> vector<1x8x1xf32>
    %45 = vector.broadcast %44 : vector<1x8x1xf32> to vector<1x8x8xf32>
    %46 = arith.mulf %41, %45 : vector<1x8x8xf32>
    "tpu.trace_start"() <{level = 10 : i32, message = "bqk,bkd->bqd"}> : () -> ()
    %cst_19 = arith.constant dense<0.000000e+00> : vector<1x8x16xf32>
    %47 = tpu.matmul %46, %33, %cst_19 {dimension_numbers = #tpu.dot_dimension_numbers<[2], [1], [1], [2], [0, 0, 0, 1, 1, 2], [0], [0]>} : vector<1x8x8xf32>, vector<1x8x16xf32>, vector<1x8x16xf32> -> vector<1x8x16xf32>
    "tpu.trace_stop"() : () -> ()
    %48 = vector.shape_cast %47 : vector<1x8x16xf32> to vector<8x16xf32>
    %49 = vector.extract_strided_slice %8 {offsets = [16, 0], sizes = [16, 32], strides = [1, 1]} : vector<64x32xf32> to vector<16x32xf32>
    %cst_20 = arith.constant dense<0.000000e+00> : vector<8x32xf32>
    %50 = tpu.matmul %48, %49, %cst_20 {dimension_numbers = #tpu.dot_dimension_numbers<[1], [0], [0], [1], [0, 0, 1, 1], [], []>} : vector<8x16xf32>, vector<16x32xf32>, vector<8x32xf32> -> vector<8x32xf32>
    %51 = arith.addf %30, %50 : vector<8x32xf32>
    %52 = vector.extract_strided_slice %7 {offsets = [0, 0, 32], sizes = [1, 8, 16], strides = [1, 1, 1]} : vector<1x8x192xf32> to vector<1x8x16xf32>
    %53 = vector.extract_strided_slice %7 {offsets = [0, 0, 96], sizes = [1, 8, 16], strides = [1, 1, 1]} : vector<1x8x192xf32> to vector<1x8x16xf32>
    %54 = vector.extract_strided_slice %7 {offsets = [0, 0, 160], sizes = [1, 8, 16], strides = [1, 1, 1]} : vector<1x8x192xf32> to vector<1x8x16xf32>
    "tpu.trace_start"() <{level = 10 : i32, message = "bqd,bkd->bqk"}> : () -> ()
    %cst_21 = arith.constant dense<0.000000e+00> : vector<1x8x8xf32>
    %55 = tpu.matmul %52, %53, %cst_21 {dimension_numbers = #tpu.dot_dimension_numbers<[2], [2], [1], [1], [0, 0, 0, 1, 1, 1], [0], [0]>} : vector<1x8x16xf32>, vector<1x8x16xf32>, vector<1x8x8xf32> -> vector<1x8x8xf32>
    "tpu.trace_stop"() : () -> ()
    %cst_22 = arith.constant 0.353553385 : f32
    %56 = vector.broadcast %cst_22 : f32 to vector<1x8x8xf32>
    %57 = arith.mulf %55, %56 : vector<1x8x8xf32>
    %cst_23 = arith.constant dense<0xFF800000> : vector<1x8xf32>
    %58 = vector.multi_reduction <maximumf>, %57, %cst_23 [2] : vector<1x8x8xf32> to vector<1x8xf32>
    %59 = vector.shape_cast %58 : vector<1x8xf32> to vector<1x8x1xf32>
    %60 = vector.broadcast %59 : vector<1x8x1xf32> to vector<1x8x8xf32>
    %61 = arith.subf %57, %60 : vector<1x8x8xf32>
    %62 = math.exp %61 : vector<1x8x8xf32>
    %cst_24 = arith.constant dense<0.000000e+00> : vector<1x8xf32>
    %63 = vector.multi_reduction <add>, %62, %cst_24 [2] : vector<1x8x8xf32> to vector<1x8xf32>
    %64 = vector.shape_cast %63 : vector<1x8xf32> to vector<1x8x1xf32>
    %65 = tpu.reciprocal %64 {approx = true} : vector<1x8x1xf32> -> vector<1x8x1xf32>
    %66 = vector.broadcast %65 : vector<1x8x1xf32> to vector<1x8x8xf32>
    %67 = arith.mulf %62, %66 : vector<1x8x8xf32>
    "tpu.trace_start"() <{level = 10 : i32, message = "bqk,bkd->bqd"}> : () -> ()
    %cst_25 = arith.constant dense<0.000000e+00> : vector<1x8x16xf32>
    %68 = tpu.matmul %67, %54, %cst_25 {dimension_numbers = #tpu.dot_dimension_numbers<[2], [1], [1], [2], [0, 0, 0, 1, 1, 2], [0], [0]>} : vector<1x8x8xf32>, vector<1x8x16xf32>, vector<1x8x16xf32> -> vector<1x8x16xf32>
    "tpu.trace_stop"() : () -> ()
    %69 = vector.shape_cast %68 : vector<1x8x16xf32> to vector<8x16xf32>
    %70 = vector.extract_strided_slice %8 {offsets = [32, 0], sizes = [16, 32], strides = [1, 1]} : vector<64x32xf32> to vector<16x32xf32>
    %cst_26 = arith.constant dense<0.000000e+00> : vector<8x32xf32>
    %71 = tpu.matmul %69, %70, %cst_26 {dimension_numbers = #tpu.dot_dimension_numbers<[1], [0], [0], [1], [0, 0, 1, 1], [], []>} : vector<8x16xf32>, vector<16x32xf32>, vector<8x32xf32> -> vector<8x32xf32>
    %72 = arith.addf %51, %71 : vector<8x32xf32>
    %73 = vector.extract_strided_slice %7 {offsets = [0, 0, 48], sizes = [1, 8, 16], strides = [1, 1, 1]} : vector<1x8x192xf32> to vector<1x8x16xf32>
    %74 = vector.extract_strided_slice %7 {offsets = [0, 0, 112], sizes = [1, 8, 16], strides = [1, 1, 1]} : vector<1x8x192xf32> to vector<1x8x16xf32>
    %75 = vector.extract_strided_slice %7 {offsets = [0, 0, 176], sizes = [1, 8, 16], strides = [1, 1, 1]} : vector<1x8x192xf32> to vector<1x8x16xf32>
    "tpu.trace_start"() <{level = 10 : i32, message = "bqd,bkd->bqk"}> : () -> ()
    %cst_27 = arith.constant dense<0.000000e+00> : vector<1x8x8xf32>
    %76 = tpu.matmul %73, %74, %cst_27 {dimension_numbers = #tpu.dot_dimension_numbers<[2], [2], [1], [1], [0, 0, 0, 1, 1, 1], [0], [0]>} : vector<1x8x16xf32>, vector<1x8x16xf32>, vector<1x8x8xf32> -> vector<1x8x8xf32>
    "tpu.trace_stop"() : () -> ()
    %cst_28 = arith.constant 0.353553385 : f32
    %77 = vector.broadcast %cst_28 : f32 to vector<1x8x8xf32>
    %78 = arith.mulf %76, %77 : vector<1x8x8xf32>
    %cst_29 = arith.constant dense<0xFF800000> : vector<1x8xf32>
    %79 = vector.multi_reduction <maximumf>, %78, %cst_29 [2] : vector<1x8x8xf32> to vector<1x8xf32>
    %80 = vector.shape_cast %79 : vector<1x8xf32> to vector<1x8x1xf32>
    %81 = vector.broadcast %80 : vector<1x8x1xf32> to vector<1x8x8xf32>
    %82 = arith.subf %78, %81 : vector<1x8x8xf32>
    %83 = math.exp %82 : vector<1x8x8xf32>
    %cst_30 = arith.constant dense<0.000000e+00> : vector<1x8xf32>
    %84 = vector.multi_reduction <add>, %83, %cst_30 [2] : vector<1x8x8xf32> to vector<1x8xf32>
    %85 = vector.shape_cast %84 : vector<1x8xf32> to vector<1x8x1xf32>
    %86 = tpu.reciprocal %85 {approx = true} : vector<1x8x1xf32> -> vector<1x8x1xf32>
    %87 = vector.broadcast %86 : vector<1x8x1xf32> to vector<1x8x8xf32>
    %88 = arith.mulf %83, %87 : vector<1x8x8xf32>
    "tpu.trace_start"() <{level = 10 : i32, message = "bqk,bkd->bqd"}> : () -> ()
    %cst_31 = arith.constant dense<0.000000e+00> : vector<1x8x16xf32>
    %89 = tpu.matmul %88, %75, %cst_31 {dimension_numbers = #tpu.dot_dimension_numbers<[2], [1], [1], [2], [0, 0, 0, 1, 1, 2], [0], [0]>} : vector<1x8x8xf32>, vector<1x8x16xf32>, vector<1x8x16xf32> -> vector<1x8x16xf32>
    "tpu.trace_stop"() : () -> ()
    %90 = vector.shape_cast %89 : vector<1x8x16xf32> to vector<8x16xf32>
    %91 = vector.extract_strided_slice %8 {offsets = [48, 0], sizes = [16, 32], strides = [1, 1]} : vector<64x32xf32> to vector<16x32xf32>
    %cst_32 = arith.constant dense<0.000000e+00> : vector<8x32xf32>
    %92 = tpu.matmul %90, %91, %cst_32 {dimension_numbers = #tpu.dot_dimension_numbers<[1], [0], [0], [1], [0, 0, 1, 1], [], []>} : vector<8x16xf32>, vector<16x32xf32>, vector<8x32xf32> -> vector<8x32xf32>
    %93 = arith.addf %72, %92 : vector<8x32xf32>
    %c0_33 = arith.constant 0 : index
    %c0_34 = arith.constant 0 : index
    %94 = vector.load %arg5[%c0_33, %c0_34] : memref<1x32xf32, #tpu.memory_space<vmem>>, vector<1x32xf32>
    %95 = vector.broadcast %94 : vector<1x32xf32> to vector<8x32xf32>
    %96 = arith.addf %93, %95 : vector<8x32xf32>
    %97 = arith.addf %96, %1 : vector<8x32xf32>
    %cst_35 = arith.constant dense<0.000000e+00> : vector<8xf32>
    %98 = vector.multi_reduction <add>, %97, %cst_35 [1] : vector<8x32xf32> to vector<8xf32>
    %99 = vector.shape_cast %98 : vector<8xf32> to vector<8x1xf32>
    %cst_36 = arith.constant 3.200000e+01 : f32
    %100 = vector.broadcast %cst_36 : f32 to vector<8x1xf32>
    %101 = arith.divf %99, %100 : vector<8x1xf32>
    %102 = arith.mulf %97, %97 : vector<8x32xf32>
    %cst_37 = arith.constant dense<0.000000e+00> : vector<8xf32>
    %103 = vector.multi_reduction <add>, %102, %cst_37 [1] : vector<8x32xf32> to vector<8xf32>
    %104 = vector.shape_cast %103 : vector<8xf32> to vector<8x1xf32>
    %cst_38 = arith.constant 3.200000e+01 : f32
    %105 = vector.broadcast %cst_38 : f32 to vector<8x1xf32>
    %106 = arith.divf %104, %105 : vector<8x1xf32>
    %107 = arith.mulf %101, %101 : vector<8x1xf32>
    %108 = arith.subf %106, %107 : vector<8x1xf32>
    %109 = vector.broadcast %101 : vector<8x1xf32> to vector<8x32xf32>
    %110 = arith.subf %97, %109 : vector<8x32xf32>
    %cst_39 = arith.constant 9.99999974E-6 : f32
    %111 = vector.broadcast %cst_39 : f32 to vector<8x1xf32>
    %112 = arith.addf %108, %111 : vector<8x1xf32>
    %113 = math.rsqrt %112 : vector<8x1xf32>
    %114 = vector.broadcast %113 : vector<8x1xf32> to vector<8x32xf32>
    %115 = arith.mulf %110, %114 : vector<8x32xf32>
    %c0_40 = arith.constant 0 : index
    %c0_41 = arith.constant 0 : index
    %116 = vector.load %arg6[%c0_40, %c0_41] : memref<1x32xf32, #tpu.memory_space<vmem>>, vector<1x32xf32>
    %117 = vector.broadcast %116 : vector<1x32xf32> to vector<8x32xf32>
    %118 = arith.mulf %115, %117 : vector<8x32xf32>
    %c0_42 = arith.constant 0 : index
    %c0_43 = arith.constant 0 : index
    %119 = vector.load %arg7[%c0_42, %c0_43] : memref<1x32xf32, #tpu.memory_space<vmem>>, vector<1x32xf32>
    %120 = vector.broadcast %119 : vector<1x32xf32> to vector<8x32xf32>
    %121 = arith.addf %118, %120 : vector<8x32xf32>
    %122 = vector.shape_cast %121 : vector<8x32xf32> to vector<1x8x32xf32>
    %c0_44 = arith.constant 0 : index
    %c0_45 = arith.constant 0 : index
    %c0_46 = arith.constant 0 : index
    %123 = vector.load %arg8[%c0_44, %c0_45, %c0_46] : memref<1x8x32xf32, #tpu.memory_space<vmem>>, vector<1x8x32xf32>
    tpu.vector_store %arg8[%c0_44, %c0_45, %c0_46], %122 {strides = array<i32>} : memref<1x8x32xf32, #tpu.memory_space<vmem>>, vector<1x8x32xf32>,
    return
  }
  func.func @transform_0(%arg0: i32) -> (i32, i32, i32) {
    %c0_i32 = arith.constant 0 : i32
    %c0_i32_0 = arith.constant 0 : i32
    %c0_i32_1 = arith.constant 0 : i32
    return %arg0, %c0_i32, %c0_i32_0 : i32, i32, i32
  }
  func.func @transform_1(%arg0: i32) -> (i32, i32) {
    %c0_i32 = arith.constant 0 : i32
    %c0_i32_0 = arith.constant 0 : i32
    %c0_i32_1 = arith.constant 0 : i32
    return %c0_i32, %c0_i32_0 : i32, i32
  }
  func.func @transform_2(%arg0: i32) -> (i32, i32) {
    %c0_i32 = arith.constant 0 : i32
    %c0_i32_0 = arith.constant 0 : i32
    %c0_i32_1 = arith.constant 0 : i32
    return %c0_i32, %c0_i32_0 : i32, i32
  }
  func.func @transform_3(%arg0: i32) -> (i32, i32) {
    %c0_i32 = arith.constant 0 : i32
    %c0_i32_0 = arith.constant 0 : i32
    %c0_i32_1 = arith.constant 0 : i32
    return %c0_i32, %c0_i32_0 : i32, i32
  }
  func.func @transform_4(%arg0: i32) -> (i32, i32) {
    %c0_i32 = arith.constant 0 : i32
    %c0_i32_0 = arith.constant 0 : i32
    %c0_i32_1 = arith.constant 0 : i32
    return %c0_i32, %c0_i32_0 : i32, i32
  }
  func.func @transform_5(%arg0: i32) -> (i32, i32) {
    %c0_i32 = arith.constant 0 : i32
    %c0_i32_0 = arith.constant 0 : i32
    %c0_i32_1 = arith.constant 0 : i32
    return %c0_i32, %c0_i32_0 : i32, i32
  }
  func.func @transform_6(%arg0: i32) -> (i32, i32) {
    %c0_i32 = arith.constant 0 : i32
    %c0_i32_0 = arith.constant 0 : i32
    %c0_i32_1 = arith.constant 0 : i32
    return %c0_i32, %c0_i32_0 : i32, i32
  }
  func.func @transform_7(%arg0: i32) -> (i32, i32, i32) {
    %c0_i32 = arith.constant 0 : i32
    %c0_i32_0 = arith.constant 0 : i32
    %c0_i32_1 = arith.constant 0 : i32
    return %arg0, %c0_i32, %c0_i32_0 : i32, i32, i32
  }
}

</mosaic_0001>

<llo_original>
// kernel: tpu_custom_call.1
$region0: #{tpu_custom_call.1}
  #allocation0 [shape = 'u32[]', space=smem, size = 0x4, offset = 0x4, fixed_abs, tag = 'smem constant byte address 0x4 - core index']
  #allocation1 [shape = 'u32[144,128]{1,0:T(1,128)}', space=vmem, size = 0x12000, scoped, tag = 'internal scratch']
  %s0 = inlined_call_operand.vmem [shape: f32[2,8,32], index: 0, kind: input, shape index: {}]
  %s1 = inlined_call_operand.vmem [shape: f32[32,192], index: 1, kind: input, shape index: {}]
  %s2 = inlined_call_operand.vmem [shape: f32[1,192], index: 2, kind: input, shape index: {}]
  %s3 = inlined_call_operand.vmem [shape: f32[64,32], index: 3, kind: input, shape index: {}]
  %s4 = inlined_call_operand.vmem [shape: f32[1,32], index: 4, kind: input, shape index: {}]
  %s5 = inlined_call_operand.vmem [shape: f32[1,32], index: 5, kind: input, shape index: {}]
  %s6 = inlined_call_operand.vmem [shape: f32[1,32], index: 6, kind: input, shape index: {}]
  %s7 = inlined_call_operand.hbm [shape: f32[2,8,32], index: 7, kind: output, shape index: {}]
  %s8 = sld [smem:[#allocation0]]
  $region61: #{tpu_custom_call.1} parent=0
    _
  %s10 = ssub.s32 1, %s8
  %s11 = scalar_select 0, %s10, %s8
  $region1: #{tpu_custom_call.1} parent=0
    #allocation2 [shape = 'u8[8192]{0}', space=vmem, size = 0x2000, scoped, tag = 'output window, operand 0']
    #allocation3 [shape = 's32[2]{0}', space=sflag, size = 0x8, scoped, tag = 'scoped memory for tpu_custom_call.1']
    %12 = vsyncpa [#allocation3], 0
    %s13 = scalar_lea.sflag [#allocation3], 1
    %14 = vsyncpa %s13, 0
    loop: start=0, step=1, limit=4
    $region2: #{tpu_custom_call.1} parent=1 // loop_pre_header
      _
    $region3: #{tpu_custom_call.1} parent=1 // loop_header
      %s16 = sphi 0, %s20
      %p17 = scmp.ge.s32.totalorder %s16, 4
      %s26 = sphi 0, %s28
      %s29 = sphi 0, %s26
      %s30 = sphi 0, %s29
      %s46 = sphi 0, %s30
      %s50 = sphi 0, %s50
      %s52 = sphi 0, %s50
      %s53 = sphi 0, %s52
      %s67 = sphi 0, %s53
      %s71 = sphi 0, %s71
      %s73 = sphi 0, %s71
      %s74 = sphi 0, %s73
      %s88 = sphi 0, %s74
      %s92 = sphi 0, %s92
      %s94 = sphi 0, %s92
      %s95 = sphi 0, %s94
      %s109 = sphi 0, %s95
      %s113 = sphi 0, %s113
      %s115 = sphi 0, %s113
      %s116 = sphi 0, %s115
      %s130 = sphi 0, %s116
      %s134 = sphi 0, %s134
      %s136 = sphi 0, %s134
      %s137 = sphi 0, %s136
      %s151 = sphi 0, %s137
      %s155 = sphi 0, %s155
      %s157 = sphi 0, %s155
      %s158 = sphi 0, %s157
      %s172 = sphi 0, %s158
      %s178 = sphi 0, %s180
      %s181 = sphi 0, %s178
      %s182 = sphi 0, %s181
      %s198 = sphi 0, %s182
    $region4: #{tpu_custom_call.1} parent=1 // loop_header_branch
      %19 = sbr.rel (%p17) target = $region8
    $region5: #{tpu_custom_call.1} parent=1 // loop_body
      %s21 = ssub.s32 %s16, 1
      %s22 = ssub.s32 %s16, 2
      %s23 = sadd.s32 %s16, 1
      %s24 = ssub.s32 %s16, %s23
      %p25 = scmp.eq.s32.totalorder %s24, 0
      %s27 = sadd.s32 %s26, 1
      %s28 = scalar_select %p25, %s26, %s27
      %p31 = pneg %p25
      %p32 = scmp.eq.s32.totalorder %s16, 1
      %p33 = por %p31, %p32
      %p34 = scmp.ne.s32.totalorder %s26, %s29
      %p35 = scmp.eq.s32.totalorder %s16, 0
      %p36 = por %p34, %p35
      %p37 = scmp.ne.s32.totalorder %s26, %s29
      %p38 = scmp.eq.s32.totalorder %s21, 1
      %p39 = por %p37, %p38
      %p40 = scmp.ne.s32.totalorder %s29, %s30
      %p41 = scmp.eq.s32.totalorder %s21, 0
      %p42 = por %p40, %p41
      %p43 = scmp.ne.s32.totalorder %s29, %s30
      %p44 = scmp.eq.s32.totalorder %s22, 1
      %p45 = por %p43, %p44
      %p47 = scmp.ne.s32.totalorder %s30, %s46
      %p48 = scmp.eq.s32.totalorder %s22, 0
      %p49 = por %p47, %p48
      %s51 = sadd.s32 %s50, 1
      %p54 = scmp.eq.s32.totalorder %s16, 1
      %p55 = scmp.ne.s32.totalorder %s50, %s52
      %p56 = scmp.eq.s32.totalorder %s16, 0
      %p57 = por %p55, %p56
      %p58 = scmp.ne.s32.totalorder %s50, %s52
      %p59 = scmp.eq.s32.totalorder %s21, 1
      %p60 = por %p58, %p59
      %p61 = scmp.ne.s32.totalorder %s52, %s53
      %p62 = scmp.eq.s32.totalorder %s21, 0
      %p63 = por %p61, %p62
      %p64 = scmp.ne.s32.totalorder %s52, %s53
      %p65 = scmp.eq.s32.totalorder %s22, 1
      %p66 = por %p64, %p65
      %p68 = scmp.ne.s32.totalorder %s53, %s67
      %p69 = scmp.eq.s32.totalorder %s22, 0
      %p70 = por %p68, %p69
      %s72 = sadd.s32 %s71, 1
      %p75 = scmp.eq.s32.totalorder %s16, 1
      %p76 = scmp.ne.s32.totalorder %s71, %s73
      %p77 = scmp.eq.s32.totalorder %s16, 0
      %p78 = por %p76, %p77
      %p79 = scmp.ne.s32.totalorder %s71, %s73
      %p80 = scmp.eq.s32.totalorder %s21, 1
      %p81 = por %p79, %p80
      %p82 = scmp.ne.s32.totalorder %s73, %s74
      %p83 = scmp.eq.s32.totalorder %s21, 0
      %p84 = por %p82, %p83
      %p85 = scmp.ne.s32.totalorder %s73, %s74
      %p86 = scmp.eq.s32.totalorder %s22, 1
      %p87 = por %p85, %p86
      %p89 = scmp.ne.s32.totalorder %s74, %s88
      %p90 = scmp.eq.s32.totalorder %s22, 0
      %p91 = por %p89, %p90
      %s93 = sadd.s32 %s92, 1
      %p96 = scmp.eq.s32.totalorder %s16, 1
      %p97 = scmp.ne.s32.totalorder %s92, %s94
      %p98 = scmp.eq.s32.totalorder %s16, 0
      %p99 = por %p97, %p98
      %p100 = scmp.ne.s32.totalorder %s92, %s94
      %p101 = scmp.eq.s32.totalorder %s21, 1
      %p102 = por %p100, %p101
      %p103 = scmp.ne.s32.totalorder %s94, %s95
      %p104 = scmp.eq.s32.totalorder %s21, 0
      %p105 = por %p103, %p104
      %p106 = scmp.ne.s32.totalorder %s94, %s95
      %p107 = scmp.eq.s32.totalorder %s22, 1
      %p108 = por %p106, %p107
      %p110 = scmp.ne.s32.totalorder %s95, %s109
      %p111 = scmp.eq.s32.totalorder %s22, 0
      %p112 = por %p110, %p111
      %s114 = sadd.s32 %s113, 1
      %p117 = scmp.eq.s32.totalorder %s16, 1
      %p118 = scmp.ne.s32.totalorder %s113, %s115
      %p119 = scmp.eq.s32.totalorder %s16, 0
      %p120 = por %p118, %p119
      %p121 = scmp.ne.s32.totalorder %s113, %s115
      %p122 = scmp.eq.s32.totalorder %s21, 1
      %p123 = por %p121, %p122
      %p124 = scmp.ne.s32.totalorder %s115, %s116
      %p125 = scmp.eq.s32.totalorder %s21, 0
      %p126 = por %p124, %p125
      %p127 = scmp.ne.s32.totalorder %s115, %s116
      %p128 = scmp.eq.s32.totalorder %s22, 1
      %p129 = por %p127, %p128
      %p131 = scmp.ne.s32.totalorder %s116, %s130
      %p132 = scmp.eq.s32.totalorder %s22, 0
      %p133 = por %p131, %p132
      %s135 = sadd.s32 %s134, 1
      %p138 = scmp.eq.s32.totalorder %s16, 1
      %p139 = scmp.ne.s32.totalorder %s134, %s136
      %p140 = scmp.eq.s32.totalorder %s16, 0
      %p141 = por %p139, %p140
      %p142 = scmp.ne.s32.totalorder %s134, %s136
      %p143 = scmp.eq.s32.totalorder %s21, 1
      %p144 = por %p142, %p143
      %p145 = scmp.ne.s32.totalorder %s136, %s137
      %p146 = scmp.eq.s32.totalorder %s21, 0
      %p147 = por %p145, %p146
      %p148 = scmp.ne.s32.totalorder %s136, %s137
      %p149 = scmp.eq.s32.totalorder %s22, 1
      %p150 = por %p148, %p149
      %p152 = scmp.ne.s32.totalorder %s137, %s151
      %p153 = scmp.eq.s32.totalorder %s22, 0
      %p154 = por %p152, %p153
      %s156 = sadd.s32 %s155, 1
      %p159 = scmp.eq.s32.totalorder %s16, 1
      %p160 = scmp.ne.s32.totalorder %s155, %s157
      %p161 = scmp.eq.s32.totalorder %s16, 0
      %p162 = por %p160, %p161
      %p163 = scmp.ne.s32.totalorder %s155, %s157
      %p164 = scmp.eq.s32.totalorder %s21, 1
      %p165 = por %p163, %p164
      %p166 = scmp.ne.s32.totalorder %s157, %s158
      %p167 = scmp.eq.s32.totalorder %s21, 0
      %p168 = por %p166, %p167
      %p169 = scmp.ne.s32.totalorder %s157, %s158
      %p170 = scmp.eq.s32.totalorder %s22, 1
      %p171 = por %p169, %p170
      %p173 = scmp.ne.s32.totalorder %s158, %s172
      %p174 = scmp.eq.s32.totalorder %s22, 0
      %p175 = por %p173, %p174
      %s176 = ssub.s32 %s16, %s23
      %p177 = scmp.eq.s32.totalorder %s176, 0
      %s179 = sadd.s32 %s178, 1
      %s180 = scalar_select %p177, %s178, %s179
      %p183 = pneg %p177
      %p184 = scmp.eq.s32.totalorder %s16, 1
      %p185 = por %p183, %p184
      %p186 = scmp.ne.s32.totalorder %s178, %s181
      %p187 = scmp.eq.s32.totalorder %s16, 0
      %p188 = por %p186, %p187
      %p189 = scmp.ne.s32.totalorder %s178, %s181
      %p190 = scmp.eq.s32.totalorder %s21, 1
      %p191 = por %p189, %p190
      %p192 = scmp.ne.s32.totalorder %s181, %s182
      %p193 = scmp.eq.s32.totalorder %s21, 0
      %p194 = por %p192, %p193
      %p195 = scmp.ne.s32.totalorder %s181, %s182
      %p196 = scmp.eq.s32.totalorder %s22, 1
      %p197 = por %p195, %p196
      %p199 = scmp.ne.s32.totalorder %s182, %s198
      %p200 = scmp.eq.s32.totalorder %s22, 0
      %p201 = por %p199, %p200
      %p202 = scmp.le.s32.totalorder 1, %s16
      %p203 = scmp.lt.s32.totalorder %s16, 3
      %p204 = pnand %p202, %p203
      %p205 = pneg %p204
      // Predicated region
      $region9: #{tpu_custom_call.1} parent=5 // pred_check
        _
      $region10: #{tpu_custom_call.1} parent=5 // pred_check_branch
        %207 = sbr.rel (%p204) target = $region12
      $region11: #{tpu_custom_call.1} parent=5 // pred_region
        %s208 = ssub.s32 %s16, 1
        // Predicated region
        $region13: #{tpu_custom_call.1} parent=11 // pred_check
          %p209 = pneg %p63
        $region14: #{tpu_custom_call.1} parent=11 // pred_check_branch
          %211 = sbr.rel (%p209) target = $region16
        $region15: #{tpu_custom_call.1} parent=11 // pred_region
          _
        $region16: #{tpu_custom_call.1} parent=11 // pred_fallthru
          _
        // Predicated region
        $region17: #{tpu_custom_call.1} parent=11 // pred_check
          %p212 = pneg %p84
        $region18: #{tpu_custom_call.1} parent=11 // pred_check_branch
          %214 = sbr.rel (%p212) target = $region20
        $region19: #{tpu_custom_call.1} parent=11 // pred_region
          _
        $region20: #{tpu_custom_call.1} parent=11 // pred_fallthru
          _
        // Predicated region
        $region21: #{tpu_custom_call.1} parent=11 // pred_check
          %p215 = pneg %p105
        $region22: #{tpu_custom_call.1} parent=11 // pred_check_branch
          %217 = sbr.rel (%p215) target = $region24
        $region23: #{tpu_custom_call.1} parent=11 // pred_region
          _
        $region24: #{tpu_custom_call.1} parent=11 // pred_fallthru
          _
        // Predicated region
        $region25: #{tpu_custom_call.1} parent=11 // pred_check
          %p218 = pneg %p126
        $region26: #{tpu_custom_call.1} parent=11 // pred_check_branch
          %220 = sbr.rel (%p218) target = $region28
        $region27: #{tpu_custom_call.1} parent=11 // pred_region
          _
        $region28: #{tpu_custom_call.1} parent=11 // pred_fallthru
          _
        // Predicated region
        $region29: #{tpu_custom_call.1} parent=11 // pred_check
          %p221 = pneg %p147
        $region30: #{tpu_custom_call.1} parent=11 // pred_check_branch
          %223 = sbr.rel (%p221) target = $region32
        $region31: #{tpu_custom_call.1} parent=11 // pred_region
          _
        $region32: #{tpu_custom_call.1} parent=11 // pred_fallthru
          _
        // Predicated region
        $region33: #{tpu_custom_call.1} parent=11 // pred_check
          %p224 = pneg %p168
        $region34: #{tpu_custom_call.1} parent=11 // pred_check_branch
          %226 = sbr.rel (%p224) target = $region36
        $region35: #{tpu_custom_call.1} parent=11 // pred_region
          _
        $region36: #{tpu_custom_call.1} parent=11 // pred_fallthru
          _
      $region12: #{tpu_custom_call.1} parent=5 // pred_fallthru
        _
      %p227 = scmp.lt.s32.totalorder %s16, 2
      // Predicated region
      $region37: #{tpu_custom_call.1} parent=5 // pred_check
        %p228 = pneg %p227
      $region38: #{tpu_custom_call.1} parent=5 // pred_check_branch
        %230 = sbr.rel (%p228) target = $region40
      $region39: #{tpu_custom_call.1} parent=5 // pred_region
        // Predicated region
        $region41: #{tpu_custom_call.1} parent=39 // pred_check
          %p231 = pneg %p36
        $region42: #{tpu_custom_call.1} parent=39 // pred_check_branch
          %233 = sbr.rel (%p231) target = $region44
        $region43: #{tpu_custom_call.1} parent=39 // pred_region
          %p234 = scmp.lt.s32.totalorder %s16, 1
          %s235 = scalar_select %p234, %s16, 1
          %s236 = smul.addr %s235, 8
          %s237 = scalar_lea.vmem %s0, %s236
        $region44: #{tpu_custom_call.1} parent=39 // pred_fallthru
          _
      $region40: #{tpu_custom_call.1} parent=5 // pred_fallthru
        _
      %p238 = scmp.le.s32.totalorder 1, %s16
      %p239 = scmp.lt.s32.totalorder %s16, 3
      %p240 = pnand %p238, %p239
      %p241 = pneg %p240
      // Predicated region
      $region45: #{tpu_custom_call.1} parent=5 // pred_check
        _
      $region46: #{tpu_custom_call.1} parent=5 // pred_check_branch
        %243 = sbr.rel (%p240) target = $region48
      $region47: #{tpu_custom_call.1} parent=5 // pred_region
        %s244 = ssub.s32 %s16, 1
        %p245 = scmp.lt.s32.totalorder %s21, 1
        %s246 = scalar_select %p245, %s21, 1
        %s247 = smul.addr %s246, 8
        %s248 = scalar_lea.vmem %s0, %s247
        %p249 = pneg %p42
        %p250 = pneg %p39
        %p251 = pneg %p63
        %p252 = pneg %p60
        %p253 = pneg %p84
        %p254 = pneg %p81
        %p255 = pneg %p105
        %p256 = pneg %p102
        %p257 = pneg %p126
        %p258 = pneg %p123
        %p259 = pneg %p147
        %p260 = pneg %p144
        %p261 = pneg %p168
        %p262 = pneg %p165
        %p263 = pneg %p194
        %p264 = pneg %p191
        %s265 = sand.u32 %s181, 1
        %s266 = scalar_lea.sflag [#allocation3], %s265
        %s267 = sand.u32 %s181, 1
        %s268 = smul.addr %s267, 8
        %s269 = scalar_lea.vmem [#allocation2], %s268
        %p270 = scmp.lt.s32.totalorder %s21, 1
        %s271 = scalar_select %p270, %s21, 1
        %s272 = smul.addr %s271, 8
        %s273 = scalar_lea.vmem %s0, %s272
        %v274 = vld [vmem:[%s273] sm:$0xff]
        %v275 = vld [vmem:[%s1] sm:$0xff]
        %v276 = vld [vmem:[%s1 + $0x8] sm:$0xff]
        %v277 = vld [vmem:[%s1 + $0x10] sm:$0xff]
        %v278 = vld [vmem:[%s1 + $0x18] sm:$0xff]
        %v279 = vld [vmem:[%s1 + $0x20] sm:$0xff]
        %v280 = vld [vmem:[%s1 + $0x28] sm:$0xff]
        %v281 = vld [vmem:[%s1 + $0x30] sm:$0xff]
        %v282 = vld [vmem:[%s1 + $0x38] sm:$0xff]
        %v283 = vld [vmem:[%s2] sm:$0x3]
        %v285 = vlaneseq
        %v286 = vshrl.u32 %v285, 7
        %v287 = vsub.s32 0, %v286
        %v288 = vrot.slane %v283, %v287
        %v289 = vlaneseq
        %v290 = vshrl.u32 %v289, 7
        %v291 = vsub.s32 1, %v290
        %v292 = vrot.slane %v283, %v291
        %vm295 = vcmask 261120
        %v297 = vsel %vm295, %v274, 0
        %299 = vmatprep.subr.mxu0 %v276
        %300 = vmatpush1.msra.mxu0 %v275
        %301 = vmatprep.subr.mxu0 %v278
        %302 = vmatpush1.msra.mxu0 %v277
        %303 = vmatprep.subr.mxu0 %v280
        %304 = vmatpush1.msra.mxu0 %v279
        %305 = vmatprep.subr.mxu0 %v282
        %306 = vmatpush1.msra.mxu0 %v281
        %307 = vmatprep.subr.mxu0 0.0
        %308 = vmatpush1.msra.mxu0 0.0
        %309 = vmatprep.subr.mxu0 0.0
        %310 = vmatpush1.msra.mxu0 0.0
        %311 = vmatprep.subr.mxu0 0.0
        %312 = vmatpush1.msra.mxu0 0.0
        %313 = vmatprep.subr.mxu0 0.0
        %314 = vmatpush1.msra.mxu0 0.0
        %315 = vmatprep.subr.mxu0 0.0
        %316 = vmatpush1.msra.mxu0 0.0
        %317 = vmatprep.subr.mxu0 0.0
        %318 = vmatpush1.msra.mxu0 0.0
        %319 = vmatprep.subr.mxu0 0.0
        %320 = vmatpush1.msra.mxu0 0.0
        %321 = vmatprep.subr.mxu0 0.0
        %322 = vmatpush1.msra.mxu0 0.0
        %323 = vmatprep.subr.mxu0 0.0
        %324 = vmatpush1.msra.mxu0 0.0
        %325 = vmatprep.subr.mxu0 0.0
        %326 = vmatpush1.msra.mxu0 0.0
        %327 = vmatprep.subr.mxu0 0.0
        %328 = vmatpush1.msra.mxu0 0.0
        %329 = vmatprep.subr.mxu0 0.0
        %330 = vmatpush1.msra.mxu0 0.0
        %331 = vmatprep.subr.mxu0 0.0
        %332 = vmatpush1.msra.mxu0 0.0
        %333 = vmatprep.subr.mxu0 0.0
        %334 = vmatpush1.msra.mxu0 0.0
        %335 = vmatprep.subr.mxu0 0.0
        %336 = vmatpush1.msra.mxu0 0.0
        %337 = vmatprep.subr.mxu0 0.0
        %338 = vmatpush1.msra.mxu0 0.0
        %339 = vmatprep.subr.mxu0 0.0
        %340 = vmatpush1.msra.mxu0 0.0
        %341 = vmatprep.subr.mxu0 0.0
        %342 = vmatpush1.msra.mxu0 0.0
        %343 = vmatprep.subr.mxu0 0.0
        %344 = vmatpush1.msra.mxu0 0.0
        %345 = vmatprep.subr.mxu0 0.0
        %346 = vmatpush1.msra.mxu0 0.0
        %347 = vmatprep.subr.mxu0 0.0
        %348 = vmatpush1.msra.mxu0 0.0
        %349 = vmatprep.subr.mxu0 0.0
        %350 = vmatpush1.msra.mxu0 0.0
        %351 = vmatprep.subr.mxu0 0.0
        %352 = vmatpush1.msra.mxu0 0.0
        %353 = vmatprep.subr.mxu0 0.0
        %354 = vmatpush1.msra.mxu0 0.0
        %355 = vmatprep.subr.mxu0 0.0
        %356 = vmatpush1.msra.mxu0 0.0
        %357 = vmatprep.subr.mxu0 0.0
        %358 = vmatpush1.msra.mxu0 0.0
        %359 = vmatprep.subr.mxu0 0.0
        %360 = vmatpush1.msra.mxu0 0.0
        %361 = vmatprep.subr.mxu0 0.0
        %362 = vmatpush1.msra.mxu0 0.0
        %363 = vmatprep.mubr.f32.mxu0 0.0
        %364 = vmatmul.mubr.f32.gmra.mrb[0].mxu0 %v297
        %v365 = vpop.f32.mrb[0].mxu0
        %v366 = vadd.f32 %v288, %v365
        %v367 = vpop.f32.mrb[0].mxu0
        %v368 = vadd.f32 %v292, %v367
        %369 = vdwg.mxu0
        %v370 = vld [vmem:[%s3] sm:$0xff]
        %v371 = vld [vmem:[%s3 + $0x8] sm:$0xff]
        %v372 = vld [vmem:[%s3 + $0x10] sm:$0xff]
        %v373 = vld [vmem:[%s3 + $0x18] sm:$0xff]
        %v374 = vld [vmem:[%s3 + $0x20] sm:$0xff]
        %v375 = vld [vmem:[%s3 + $0x28] sm:$0xff]
        %v376 = vld [vmem:[%s3 + $0x30] sm:$0xff]
        %v377 = vld [vmem:[%s3 + $0x38] sm:$0xff]
        %379 = vrot.lane.b32.xlu0 %v366, 64
        %v380 = vpop.permute.xlu0 %379
        %vm381 = vcmask 130048
        %v382 = vsel %vm381, %v366, 0
        %v384 = vsel %vm381, %v380, 0
        %386 = vmatprep.subr.mxu0 0.0
        %387 = vmatpush1.xpose.msra.mxu0 %v384
        %388 = vmatprep.subr.mxu0 0.0
        %389 = vmatpush1.xpose.msra.mxu0 0.0
        %390 = vmatprep.subr.mxu0 0.0
        %391 = vmatpush1.xpose.msra.mxu0 0.0
        %392 = vmatprep.subr.mxu0 0.0
        %393 = vmatpush1.xpose.msra.mxu0 0.0
        %394 = vmatprep.subr.mxu0 0.0
        %395 = vmatpush1.xpose.msra.mxu0 0.0
        %396 = vmatprep.subr.mxu0 0.0
        %397 = vmatpush1.xpose.msra.mxu0 0.0
        %398 = vmatprep.subr.mxu0 0.0
        %399 = vmatpush1.xpose.msra.mxu0 0.0
        %400 = vmatprep.subr.mxu0 0.0
        %401 = vmatpush1.xpose.msra.mxu0 0.0
        %402 = vmatprep.subr.mxu0 0.0
        %403 = vmatpush1.xpose.msra.mxu0 0.0
        %404 = vmatprep.subr.mxu0 0.0
        %405 = vmatpush1.xpose.msra.mxu0 0.0
        %406 = vmatprep.subr.mxu0 0.0
        %407 = vmatpush1.xpose.msra.mxu0 0.0
        %408 = vmatprep.subr.mxu0 0.0
        %409 = vmatpush1.xpose.msra.mxu0 0.0
        %410 = vmatprep.subr.mxu0 0.0
        %411 = vmatpush1.xpose.msra.mxu0 0.0
        %412 = vmatprep.subr.mxu0 0.0
        %413 = vmatpush1.xpose.msra.mxu0 0.0
        %414 = vmatprep.subr.mxu0 0.0
        %415 = vmatpush1.xpose.msra.mxu0 0.0
        %416 = vmatprep.subr.mxu0 0.0
        %417 = vmatpush1.xpose.msra.mxu0 0.0
        %418 = vmatprep.subr.mxu0 0.0
        %419 = vmatpush1.xpose.msra.mxu0 0.0
        %420 = vmatprep.subr.mxu0 0.0
        %421 = vmatpush1.xpose.msra.mxu0 0.0
        %422 = vmatprep.subr.mxu0 0.0
        %423 = vmatpush1.xpose.msra.mxu0 0.0
        %424 = vmatprep.subr.mxu0 0.0
        %425 = vmatpush1.xpose.msra.mxu0 0.0
        %426 = vmatprep.subr.mxu0 0.0
        %427 = vmatpush1.xpose.msra.mxu0 0.0
        %428 = vmatprep.subr.mxu0 0.0
        %429 = vmatpush1.xpose.msra.mxu0 0.0
        %430 = vmatprep.subr.mxu0 0.0
        %431 = vmatpush1.xpose.msra.mxu0 0.0
        %432 = vmatprep.subr.mxu0 0.0
        %433 = vmatpush1.xpose.msra.mxu0 0.0
        %434 = vmatprep.subr.mxu0 0.0
        %435 = vmatpush1.xpose.msra.mxu0 0.0
        %436 = vmatprep.subr.mxu0 0.0
        %437 = vmatpush1.xpose.msra.mxu0 0.0
        %438 = vmatprep.subr.mxu0 0.0
        %439 = vmatpush1.xpose.msra.mxu0 0.0
        %440 = vmatprep.subr.mxu0 0.0
        %441 = vmatpush1.xpose.msra.mxu0 0.0
        %442 = vmatprep.subr.mxu0 0.0
        %443 = vmatpush1.xpose.msra.mxu0 0.0
        %444 = vmatprep.subr.mxu0 0.0
        %445 = vmatpush1.xpose.msra.mxu0 0.0
        %446 = vmatprep.subr.mxu0 0.0
        %447 = vmatpush1.xpose.msra.mxu0 0.0
        %448 = vmatprep.subr.mxu0 0.0
        %449 = vmatpush1.xpose.msra.mxu0 0.0
        %450 = vmatprep.mubr.f32.mxu0 0.0
        %451 = vmatmul.mubr.f32.gmra.mrb[0].mxu0 %v382
        %v452 = vpop.f32.mrb[0].mxu0
        %v453 = vadd.f32 0.0, %v452
        %v454 = vpop.f32.mrb[0].mxu0
        %455 = vdwg.mxu0
        %v456 = vmul.f32 %v453, 0.35355338
        %vm457 = vcmask 64512
        %v458 = vsel %vm457, %v456, -inf
        %459 = vmax.xlane.f32.xlu0 %v458
        %v460 = vpop.xlane.xlu0 %459
        %v461 = vsub.f32 %v456, %v460
        %v462 = vmul.f32 %v461, 1.442695
        %v463 = vpow.pop %v462
        %v464 = vsel %vm457, %v463, 0.0
        %465 = vadd.xlane.f32.xlu0 %v464
        %v466 = vpop.xlane.xlu0 %465
        %v467 = vrcp.pop %v466
        %v468 = vmul.f32 %v463, %v467
        %v470 = vsel %vm457, %v468, 0
        %472 = vmatprep.subr.mxu0 0.0
        %473 = vmatpush1.msra.mxu0 %v368
        %474 = vmatprep.subr.mxu0 0.0
        %475 = vmatpush1.msra.mxu0 0.0
        %476 = vmatprep.subr.mxu0 0.0
        %477 = vmatpush1.msra.mxu0 0.0
        %478 = vmatprep.subr.mxu0 0.0
        %479 = vmatpush1.msra.mxu0 0.0
        %480 = vmatprep.subr.mxu0 0.0
        %481 = vmatpush1.msra.mxu0 0.0
        %482 = vmatprep.subr.mxu0 0.0
        %483 = vmatpush1.msra.mxu0 0.0
        %484 = vmatprep.subr.mxu0 0.0
        %485 = vmatpush1.msra.mxu0 0.0
        %486 = vmatprep.subr.mxu0 0.0
        %487 = vmatpush1.msra.mxu0 0.0
        %488 = vmatprep.subr.mxu0 0.0
        %489 = vmatpush1.msra.mxu0 0.0
        %490 = vmatprep.subr.mxu0 0.0
        %491 = vmatpush1.msra.mxu0 0.0
        %492 = vmatprep.subr.mxu0 0.0
        %493 = vmatpush1.msra.mxu0 0.0
        %494 = vmatprep.subr.mxu0 0.0
        %495 = vmatpush1.msra.mxu0 0.0
        %496 = vmatprep.subr.mxu0 0.0
        %497 = vmatpush1.msra.mxu0 0.0
        %498 = vmatprep.subr.mxu0 0.0
        %499 = vmatpush1.msra.mxu0 0.0
        %500 = vmatprep.subr.mxu0 0.0
        %501 = vmatpush1.msra.mxu0 0.0
        %502 = vmatprep.subr.mxu0 0.0
        %503 = vmatpush1.msra.mxu0 0.0
        %504 = vmatprep.subr.mxu0 0.0
        %505 = vmatpush1.msra.mxu0 0.0
        %506 = vmatprep.subr.mxu0 0.0
        %507 = vmatpush1.msra.mxu0 0.0
        %508 = vmatprep.subr.mxu0 0.0
        %509 = vmatpush1.msra.mxu0 0.0
        %510 = vmatprep.subr.mxu0 0.0
        %511 = vmatpush1.msra.mxu0 0.0
        %512 = vmatprep.subr.mxu0 0.0
        %513 = vmatpush1.msra.mxu0 0.0
        %514 = vmatprep.subr.mxu0 0.0
        %515 = vmatpush1.msra.mxu0 0.0
        %516 = vmatprep.subr.mxu0 0.0
        %517 = vmatpush1.msra.mxu0 0.0
        %518 = vmatprep.subr.mxu0 0.0
        %519 = vmatpush1.msra.mxu0 0.0
        %520 = vmatprep.subr.mxu0 0.0
        %521 = vmatpush1.msra.mxu0 0.0
        %522 = vmatprep.subr.mxu0 0.0
        %523 = vmatpush1.msra.mxu0 0.0
        %524 = vmatprep.subr.mxu0 0.0
        %525 = vmatpush1.msra.mxu0 0.0
        %526 = vmatprep.subr.mxu0 0.0
        %527 = vmatpush1.msra.mxu0 0.0
        %528 = vmatprep.subr.mxu0 0.0
        %529 = vmatpush1.msra.mxu0 0.0
        %530 = vmatprep.subr.mxu0 0.0
        %531 = vmatpush1.msra.mxu0 0.0
        %532 = vmatprep.subr.mxu0 0.0
        %533 = vmatpush1.msra.mxu0 0.0
        %534 = vmatprep.subr.mxu0 0.0
        %535 = vmatpush1.msra.mxu0 0.0
        %536 = vmatprep.mubr.f32.mxu0 0.0
        %537 = vmatmul.mubr.f32.gmra.mrb[0].mxu0 %v470
        %v538 = vpop.f32.mrb[0].mxu0
        %v539 = vadd.f32 0.0, %v538
        %v540 = vpop.f32.mrb[0].mxu0
        %541 = vdwg.mxu0
        %542 = vrot.lane.b32.xlu0 %v366, 112
        %v543 = vpop.permute.xlu0 %542
        %544 = vrot.lane.b32.xlu0 %v366, 48
        %v545 = vpop.permute.xlu0 %544
        %v546 = vsel %vm381, %v543, 0
        %v548 = vsel %vm381, %v545, 0
        %550 = vmatprep.subr.mxu0 0.0
        %551 = vmatpush1.xpose.msra.mxu0 %v548
        %552 = vmatprep.subr.mxu0 0.0
        %553 = vmatpush1.xpose.msra.mxu0 0.0
        %554 = vmatprep.subr.mxu0 0.0
        %555 = vmatpush1.xpose.msra.mxu0 0.0
        %556 = vmatprep.subr.mxu0 0.0
        %557 = vmatpush1.xpose.msra.mxu0 0.0
        %558 = vmatprep.subr.mxu0 0.0
        %559 = vmatpush1.xpose.msra.mxu0 0.0
        %560 = vmatprep.subr.mxu0 0.0
        %561 = vmatpush1.xpose.msra.mxu0 0.0
        %562 = vmatprep.subr.mxu0 0.0
        %563 = vmatpush1.xpose.msra.mxu0 0.0
        %564 = vmatprep.subr.mxu0 0.0
        %565 = vmatpush1.xpose.msra.mxu0 0.0
        %566 = vmatprep.subr.mxu0 0.0
        %567 = vmatpush1.xpose.msra.mxu0 0.0
        %568 = vmatprep.subr.mxu0 0.0
        %569 = vmatpush1.xpose.msra.mxu0 0.0
        %570 = vmatprep.subr.mxu0 0.0
        %571 = vmatpush1.xpose.msra.mxu0 0.0
        %572 = vmatprep.subr.mxu0 0.0
        %573 = vmatpush1.xpose.msra.mxu0 0.0
        %574 = vmatprep.subr.mxu0 0.0
        %575 = vmatpush1.xpose.msra.mxu0 0.0
        %576 = vmatprep.subr.mxu0 0.0
        %577 = vmatpush1.xpose.msra.mxu0 0.0
        %578 = vmatprep.subr.mxu0 0.0
        %579 = vmatpush1.xpose.msra.mxu0 0.0
        %580 = vmatprep.subr.mxu0 0.0
        %581 = vmatpush1.xpose.msra.mxu0 0.0
        %582 = vmatprep.subr.mxu0 0.0
        %583 = vmatpush1.xpose.msra.mxu0 0.0
        %584 = vmatprep.subr.mxu0 0.0
        %585 = vmatpush1.xpose.msra.mxu0 0.0
        %586 = vmatprep.subr.mxu0 0.0
        %587 = vmatpush1.xpose.msra.mxu0 0.0
        %588 = vmatprep.subr.mxu0 0.0
        %589 = vmatpush1.xpose.msra.mxu0 0.0
        %590 = vmatprep.subr.mxu0 0.0
        %591 = vmatpush1.xpose.msra.mxu0 0.0
        %592 = vmatprep.subr.mxu0 0.0
        %593 = vmatpush1.xpose.msra.mxu0 0.0
        %594 = vmatprep.subr.mxu0 0.0
        %595 = vmatpush1.xpose.msra.mxu0 0.0
        %596 = vmatprep.subr.mxu0 0.0
        %597 = vmatpush1.xpose.msra.mxu0 0.0
        %598 = vmatprep.subr.mxu0 0.0
        %599 = vmatpush1.xpose.msra.mxu0 0.0
        %600 = vmatprep.subr.mxu0 0.0
        %601 = vmatpush1.xpose.msra.mxu0 0.0
        %602 = vmatprep.subr.mxu0 0.0
        %603 = vmatpush1.xpose.msra.mxu0 0.0
        %604 = vmatprep.subr.mxu0 0.0
        %605 = vmatpush1.xpose.msra.mxu0 0.0
        %606 = vmatprep.subr.mxu0 0.0
        %607 = vmatpush1.xpose.msra.mxu0 0.0
        %608 = vmatprep.subr.mxu0 0.0
        %609 = vmatpush1.xpose.msra.mxu0 0.0
        %610 = vmatprep.subr.mxu0 0.0
        %611 = vmatpush1.xpose.msra.mxu0 0.0
        %612 = vmatprep.subr.mxu0 0.0
        %613 = vmatpush1.xpose.msra.mxu0 0.0
        %614 = vmatprep.mubr.f32.mxu0 0.0
        %615 = vmatmul.mubr.f32.gmra.mrb[0].mxu0 %v546
        %v616 = vpop.f32.mrb[0].mxu0
        %v617 = vadd.f32 0.0, %v616
        %v618 = vpop.f32.mrb[0].mxu0
        %619 = vdwg.mxu0
        %v620 = vmul.f32 %v617, 0.35355338
        %v621 = vsel %vm457, %v620, -inf
        %622 = vmax.xlane.f32.xlu0 %v621
        %v623 = vpop.xlane.xlu0 %622
        %v624 = vsub.f32 %v620, %v623
        %v625 = vmul.f32 %v624, 1.442695
        %v626 = vpow.pop %v625
        %v627 = vsel %vm457, %v626, 0.0
        %628 = vadd.xlane.f32.xlu0 %v627
        %v629 = vpop.xlane.xlu0 %628
        %v630 = vrcp.pop %v629
        %v631 = vmul.f32 %v626, %v630
        %633 = vrot.lane.b32.xlu0 %v368, 112
        %v634 = vpop.permute.xlu0 %633
        %v637 = vsel %vm457, %v631, 0
        %639 = vmatprep.subr.mxu0 0.0
        %640 = vmatpush1.msra.mxu0 %v634
        %641 = vmatprep.subr.mxu0 0.0
        %642 = vmatpush1.msra.mxu0 0.0
        %643 = vmatprep.subr.mxu0 0.0
        %644 = vmatpush1.msra.mxu0 0.0
        %645 = vmatprep.subr.mxu0 0.0
        %646 = vmatpush1.msra.mxu0 0.0
        %647 = vmatprep.subr.mxu0 0.0
        %648 = vmatpush1.msra.mxu0 0.0
        %649 = vmatprep.subr.mxu0 0.0
        %650 = vmatpush1.msra.mxu0 0.0
        %651 = vmatprep.subr.mxu0 0.0
        %652 = vmatpush1.msra.mxu0 0.0
        %653 = vmatprep.subr.mxu0 0.0
        %654 = vmatpush1.msra.mxu0 0.0
        %655 = vmatprep.subr.mxu0 0.0
        %656 = vmatpush1.msra.mxu0 0.0
        %657 = vmatprep.subr.mxu0 0.0
        %658 = vmatpush1.msra.mxu0 0.0
        %659 = vmatprep.subr.mxu0 0.0
        %660 = vmatpush1.msra.mxu0 0.0
        %661 = vmatprep.subr.mxu0 0.0
        %662 = vmatpush1.msra.mxu0 0.0
        %663 = vmatprep.subr.mxu0 0.0
        %664 = vmatpush1.msra.mxu0 0.0
        %665 = vmatprep.subr.mxu0 0.0
        %666 = vmatpush1.msra.mxu0 0.0
        %667 = vmatprep.subr.mxu0 0.0
        %668 = vmatpush1.msra.mxu0 0.0
        %669 = vmatprep.subr.mxu0 0.0
        %670 = vmatpush1.msra.mxu0 0.0
        %671 = vmatprep.subr.mxu0 0.0
        %672 = vmatpush1.msra.mxu0 0.0
        %673 = vmatprep.subr.mxu0 0.0
        %674 = vmatpush1.msra.mxu0 0.0
        %675 = vmatprep.subr.mxu0 0.0
        %676 = vmatpush1.msra.mxu0 0.0
        %677 = vmatprep.subr.mxu0 0.0
        %678 = vmatpush1.msra.mxu0 0.0
        %679 = vmatprep.subr.mxu0 0.0
        %680 = vmatpush1.msra.mxu0 0.0
        %681 = vmatprep.subr.mxu0 0.0
        %682 = vmatpush1.msra.mxu0 0.0
        %683 = vmatprep.subr.mxu0 0.0
        %684 = vmatpush1.msra.mxu0 0.0
        %685 = vmatprep.subr.mxu0 0.0
        %686 = vmatpush1.msra.mxu0 0.0
        %687 = vmatprep.subr.mxu0 0.0
        %688 = vmatpush1.msra.mxu0 0.0
        %689 = vmatprep.subr.mxu0 0.0
        %690 = vmatpush1.msra.mxu0 0.0
        %691 = vmatprep.subr.mxu0 0.0
        %692 = vmatpush1.msra.mxu0 0.0
        %693 = vmatprep.subr.mxu0 0.0
        %694 = vmatpush1.msra.mxu0 0.0
        %695 = vmatprep.subr.mxu0 0.0
        %696 = vmatpush1.msra.mxu0 0.0
        %697 = vmatprep.subr.mxu0 0.0
        %698 = vmatpush1.msra.mxu0 0.0
        %699 = vmatprep.subr.mxu0 0.0
        %700 = vmatpush1.msra.mxu0 0.0
        %701 = vmatprep.subr.mxu0 0.0
        %702 = vmatpush1.msra.mxu0 0.0
        %703 = vmatprep.mubr.f32.mxu0 0.0
        %704 = vmatmul.mubr.f32.gmra.mrb[0].mxu0 %v637
        %v705 = vpop.f32.mrb[0].mxu0
        %v706 = vadd.f32 0.0, %v705
        %v707 = vpop.f32.mrb[0].mxu0
        %708 = vdwg.mxu0
        %v710 = vsel %vm381, %v706, 0
        %712 = vmatprep.subr.mxu0 0.0
        %713 = vmatpush1.msra.mxu0 %v372
        %714 = vmatprep.subr.mxu0 0.0
        %715 = vmatpush1.msra.mxu0 %v373
        %716 = vmatprep.subr.mxu0 0.0
        %717 = vmatpush1.msra.mxu0 0.0
        %718 = vmatprep.subr.mxu0 0.0
        %719 = vmatpush1.msra.mxu0 0.0
        %720 = vmatprep.subr.mxu0 0.0
        %721 = vmatpush1.msra.mxu0 0.0
        %722 = vmatprep.subr.mxu0 0.0
        %723 = vmatpush1.msra.mxu0 0.0
        %724 = vmatprep.subr.mxu0 0.0
        %725 = vmatpush1.msra.mxu0 0.0
        %726 = vmatprep.subr.mxu0 0.0
        %727 = vmatpush1.msra.mxu0 0.0
        %728 = vmatprep.subr.mxu0 0.0
        %729 = vmatpush1.msra.mxu0 0.0
        %730 = vmatprep.subr.mxu0 0.0
        %731 = vmatpush1.msra.mxu0 0.0
        %732 = vmatprep.subr.mxu0 0.0
        %733 = vmatpush1.msra.mxu0 0.0
        %734 = vmatprep.subr.mxu0 0.0
        %735 = vmatpush1.msra.mxu0 0.0
        %736 = vmatprep.subr.mxu0 0.0
        %737 = vmatpush1.msra.mxu0 0.0
        %738 = vmatprep.subr.mxu0 0.0
        %739 = vmatpush1.msra.mxu0 0.0
        %740 = vmatprep.subr.mxu0 0.0
        %741 = vmatpush1.msra.mxu0 0.0
        %742 = vmatprep.subr.mxu0 0.0
        %743 = vmatpush1.msra.mxu0 0.0
        %744 = vmatprep.subr.mxu0 0.0
        %745 = vmatpush1.msra.mxu0 0.0
        %746 = vmatprep.subr.mxu0 0.0
        %747 = vmatpush1.msra.mxu0 0.0
        %748 = vmatprep.subr.mxu0 0.0
        %749 = vmatpush1.msra.mxu0 0.0
        %750 = vmatprep.subr.mxu0 0.0
        %751 = vmatpush1.msra.mxu0 0.0
        %752 = vmatprep.subr.mxu0 0.0
        %753 = vmatpush1.msra.mxu0 0.0
        %754 = vmatprep.subr.mxu0 0.0
        %755 = vmatpush1.msra.mxu0 0.0
        %756 = vmatprep.subr.mxu0 0.0
        %757 = vmatpush1.msra.mxu0 0.0
        %758 = vmatprep.subr.mxu0 0.0
        %759 = vmatpush1.msra.mxu0 0.0
        %760 = vmatprep.subr.mxu0 0.0
        %761 = vmatpush1.msra.mxu0 0.0
        %762 = vmatprep.subr.mxu0 0.0
        %763 = vmatpush1.msra.mxu0 0.0
        %764 = vmatprep.subr.mxu0 0.0
        %765 = vmatpush1.msra.mxu0 0.0
        %766 = vmatprep.subr.mxu0 0.0
        %767 = vmatpush1.msra.mxu0 0.0
        %768 = vmatprep.subr.mxu0 0.0
        %769 = vmatpush1.msra.mxu0 0.0
        %770 = vmatprep.subr.mxu0 0.0
        %771 = vmatpush1.msra.mxu0 0.0
        %772 = vmatprep.subr.mxu0 0.0
        %773 = vmatpush1.msra.mxu0 0.0
        %774 = vmatprep.subr.mxu0 0.0
        %775 = vmatpush1.msra.mxu0 0.0
        %776 = vmatprep.mubr.f32.mxu0 0.0
        %777 = vmatmul.mubr.f32.gmra.mrb[0].mxu0 %v710
        %v778 = vpop.f32.mrb[0].mxu0
        %v779 = vadd.f32 0.0, %v778
        %v780 = vpop.f32.mrb[0].mxu0
        %781 = vdwg.mxu0
        %v783 = vsel %vm381, %v539, 0
        %785 = vmatprep.subr.mxu0 0.0
        %786 = vmatpush1.msra.mxu0 %v370
        %787 = vmatprep.subr.mxu0 0.0
        %788 = vmatpush1.msra.mxu0 %v371
        %789 = vmatprep.subr.mxu0 0.0
        %790 = vmatpush1.msra.mxu0 0.0
        %791 = vmatprep.subr.mxu0 0.0
        %792 = vmatpush1.msra.mxu0 0.0
        %793 = vmatprep.subr.mxu0 0.0
        %794 = vmatpush1.msra.mxu0 0.0
        %795 = vmatprep.subr.mxu0 0.0
        %796 = vmatpush1.msra.mxu0 0.0
        %797 = vmatprep.subr.mxu0 0.0
        %798 = vmatpush1.msra.mxu0 0.0
        %799 = vmatprep.subr.mxu0 0.0
        %800 = vmatpush1.msra.mxu0 0.0
        %801 = vmatprep.subr.mxu0 0.0
        %802 = vmatpush1.msra.mxu0 0.0
        %803 = vmatprep.subr.mxu0 0.0
        %804 = vmatpush1.msra.mxu0 0.0
        %805 = vmatprep.subr.mxu0 0.0
        %806 = vmatpush1.msra.mxu0 0.0
        %807 = vmatprep.subr.mxu0 0.0
        %808 = vmatpush1.msra.mxu0 0.0
        %809 = vmatprep.subr.mxu0 0.0
        %810 = vmatpush1.msra.mxu0 0.0
        %811 = vmatprep.subr.mxu0 0.0
        %812 = vmatpush1.msra.mxu0 0.0
        %813 = vmatprep.subr.mxu0 0.0
        %814 = vmatpush1.msra.mxu0 0.0
        %815 = vmatprep.subr.mxu0 0.0
        %816 = vmatpush1.msra.mxu0 0.0
        %817 = vmatprep.subr.mxu0 0.0
        %818 = vmatpush1.msra.mxu0 0.0
        %819 = vmatprep.subr.mxu0 0.0
        %820 = vmatpush1.msra.mxu0 0.0
        %821 = vmatprep.subr.mxu0 0.0
        %822 = vmatpush1.msra.mxu0 0.0
        %823 = vmatprep.subr.mxu0 0.0
        %824 = vmatpush1.msra.mxu0 0.0
        %825 = vmatprep.subr.mxu0 0.0
        %826 = vmatpush1.msra.mxu0 0.0
        %827 = vmatprep.subr.mxu0 0.0
        %828 = vmatpush1.msra.mxu0 0.0
        %829 = vmatprep.subr.mxu0 0.0
        %830 = vmatpush1.msra.mxu0 0.0
        %831 = vmatprep.subr.mxu0 0.0
        %832 = vmatpush1.msra.mxu0 0.0
        %833 = vmatprep.subr.mxu0 0.0
        %834 = vmatpush1.msra.mxu0 0.0
        %835 = vmatprep.subr.mxu0 0.0
        %836 = vmatpush1.msra.mxu0 0.0
        %837 = vmatprep.subr.mxu0 0.0
        %838 = vmatpush1.msra.mxu0 0.0
        %839 = vmatprep.subr.mxu0 0.0
        %840 = vmatpush1.msra.mxu0 0.0
        %841 = vmatprep.subr.mxu0 0.0
        %842 = vmatpush1.msra.mxu0 0.0
        %843 = vmatprep.subr.mxu0 0.0
        %844 = vmatpush1.msra.mxu0 0.0
        %845 = vmatprep.subr.mxu0 0.0
        %846 = vmatpush1.msra.mxu0 0.0
        %847 = vmatprep.subr.mxu0 0.0
        %848 = vmatpush1.msra.mxu0 0.0
        %849 = vmatprep.mubr.f32.mxu0 0.0
        %850 = vmatmul.mubr.f32.gmra.mrb[0].mxu0 %v783
        %v851 = vpop.f32.mrb[0].mxu0
        %v852 = vadd.f32 %v779, %v851
        %v853 = vpop.f32.mrb[0].mxu0
        %854 = vdwg.mxu0
        %855 = vrot.lane.b32.xlu0 %v366, 96
        %v856 = vpop.permute.xlu0 %855
        %857 = vrot.lane.b32.xlu0 %v366, 32
        %v858 = vpop.permute.xlu0 %857
        %v859 = vsel %vm381, %v856, 0
        %v861 = vsel %vm381, %v858, 0
        %863 = vmatprep.subr.mxu0 0.0
        %864 = vmatpush1.xpose.msra.mxu0 %v861
        %865 = vmatprep.subr.mxu0 0.0
        %866 = vmatpush1.xpose.msra.mxu0 0.0
        %867 = vmatprep.subr.mxu0 0.0
        %868 = vmatpush1.xpose.msra.mxu0 0.0
        %869 = vmatprep.subr.mxu0 0.0
        %870 = vmatpush1.xpose.msra.mxu0 0.0
        %871 = vmatprep.subr.mxu0 0.0
        %872 = vmatpush1.xpose.msra.mxu0 0.0
        %873 = vmatprep.subr.mxu0 0.0
        %874 = vmatpush1.xpose.msra.mxu0 0.0
        %875 = vmatprep.subr.mxu0 0.0
        %876 = vmatpush1.xpose.msra.mxu0 0.0
        %877 = vmatprep.subr.mxu0 0.0
        %878 = vmatpush1.xpose.msra.mxu0 0.0
        %879 = vmatprep.subr.mxu0 0.0
        %880 = vmatpush1.xpose.msra.mxu0 0.0
        %881 = vmatprep.subr.mxu0 0.0
        %882 = vmatpush1.xpose.msra.mxu0 0.0
        %883 = vmatprep.subr.mxu0 0.0
        %884 = vmatpush1.xpose.msra.mxu0 0.0
        %885 = vmatprep.subr.mxu0 0.0
        %886 = vmatpush1.xpose.msra.mxu0 0.0
        %887 = vmatprep.subr.mxu0 0.0
        %888 = vmatpush1.xpose.msra.mxu0 0.0
        %889 = vmatprep.subr.mxu0 0.0
        %890 = vmatpush1.xpose.msra.mxu0 0.0
        %891 = vmatprep.subr.mxu0 0.0
        %892 = vmatpush1.xpose.msra.mxu0 0.0
        %893 = vmatprep.subr.mxu0 0.0
        %894 = vmatpush1.xpose.msra.mxu0 0.0
        %895 = vmatprep.subr.mxu0 0.0
        %896 = vmatpush1.xpose.msra.mxu0 0.0
        %897 = vmatprep.subr.mxu0 0.0
        %898 = vmatpush1.xpose.msra.mxu0 0.0
        %899 = vmatprep.subr.mxu0 0.0
        %900 = vmatpush1.xpose.msra.mxu0 0.0
        %901 = vmatprep.subr.mxu0 0.0
        %902 = vmatpush1.xpose.msra.mxu0 0.0
        %903 = vmatprep.subr.mxu0 0.0
        %904 = vmatpush1.xpose.msra.mxu0 0.0
        %905 = vmatprep.subr.mxu0 0.0
        %906 = vmatpush1.xpose.msra.mxu0 0.0
        %907 = vmatprep.subr.mxu0 0.0
        %908 = vmatpush1.xpose.msra.mxu0 0.0
        %909 = vmatprep.subr.mxu0 0.0
        %910 = vmatpush1.xpose.msra.mxu0 0.0
        %911 = vmatprep.subr.mxu0 0.0
        %912 = vmatpush1.xpose.msra.mxu0 0.0
        %913 = vmatprep.subr.mxu0 0.0
        %914 = vmatpush1.xpose.msra.mxu0 0.0
        %915 = vmatprep.subr.mxu0 0.0
        %916 = vmatpush1.xpose.msra.mxu0 0.0
        %917 = vmatprep.subr.mxu0 0.0
        %918 = vmatpush1.xpose.msra.mxu0 0.0
        %919 = vmatprep.subr.mxu0 0.0
        %920 = vmatpush1.xpose.msra.mxu0 0.0
        %921 = vmatprep.subr.mxu0 0.0
        %922 = vmatpush1.xpose.msra.mxu0 0.0
        %923 = vmatprep.subr.mxu0 0.0
        %924 = vmatpush1.xpose.msra.mxu0 0.0
        %925 = vmatprep.subr.mxu0 0.0
        %926 = vmatpush1.xpose.msra.mxu0 0.0
        %927 = vmatprep.mubr.f32.mxu0 0.0
        %928 = vmatmul.mubr.f32.gmra.mrb[0].mxu0 %v859
        %v929 = vpop.f32.mrb[0].mxu0
        %v930 = vadd.f32 0.0, %v929
        %v931 = vpop.f32.mrb[0].mxu0
        %932 = vdwg.mxu0
        %v933 = vmul.f32 %v930, 0.35355338
        %v934 = vsel %vm457, %v933, -inf
        %935 = vmax.xlane.f32.xlu0 %v934
        %v936 = vpop.xlane.xlu0 %935
        %v937 = vsub.f32 %v933, %v936
        %v938 = vmul.f32 %v937, 1.442695
        %v939 = vpow.pop %v938
        %v940 = vsel %vm457, %v939, 0.0
        %941 = vadd.xlane.f32.xlu0 %v940
        %v942 = vpop.xlane.xlu0 %941
        %v943 = vrcp.pop %v942
        %v944 = vmul.f32 %v939, %v943
        %945 = vrot.lane.b32.xlu0 %v368, 96
        %v946 = vpop.permute.xlu0 %945
        %v949 = vsel %vm457, %v944, 0
        %951 = vmatprep.subr.mxu0 0.0
        %952 = vmatpush1.msra.mxu0 %v946
        %953 = vmatprep.subr.mxu0 0.0
        %954 = vmatpush1.msra.mxu0 0.0
        %955 = vmatprep.subr.mxu0 0.0
        %956 = vmatpush1.msra.mxu0 0.0
        %957 = vmatprep.subr.mxu0 0.0
        %958 = vmatpush1.msra.mxu0 0.0
        %959 = vmatprep.subr.mxu0 0.0
        %960 = vmatpush1.msra.mxu0 0.0
        %961 = vmatprep.subr.mxu0 0.0
        %962 = vmatpush1.msra.mxu0 0.0
        %963 = vmatprep.subr.mxu0 0.0
        %964 = vmatpush1.msra.mxu0 0.0
        %965 = vmatprep.subr.mxu0 0.0
        %966 = vmatpush1.msra.mxu0 0.0
        %967 = vmatprep.subr.mxu0 0.0
        %968 = vmatpush1.msra.mxu0 0.0
        %969 = vmatprep.subr.mxu0 0.0
        %970 = vmatpush1.msra.mxu0 0.0
        %971 = vmatprep.subr.mxu0 0.0
        %972 = vmatpush1.msra.mxu0 0.0
        %973 = vmatprep.subr.mxu0 0.0
        %974 = vmatpush1.msra.mxu0 0.0
        %975 = vmatprep.subr.mxu0 0.0
        %976 = vmatpush1.msra.mxu0 0.0
        %977 = vmatprep.subr.mxu0 0.0
        %978 = vmatpush1.msra.mxu0 0.0
        %979 = vmatprep.subr.mxu0 0.0
        %980 = vmatpush1.msra.mxu0 0.0
        %981 = vmatprep.subr.mxu0 0.0
        %982 = vmatpush1.msra.mxu0 0.0
        %983 = vmatprep.subr.mxu0 0.0
        %984 = vmatpush1.msra.mxu0 0.0
        %985 = vmatprep.subr.mxu0 0.0
        %986 = vmatpush1.msra.mxu0 0.0
        %987 = vmatprep.subr.mxu0 0.0
        %988 = vmatpush1.msra.mxu0 0.0
        %989 = vmatprep.subr.mxu0 0.0
        %990 = vmatpush1.msra.mxu0 0.0
        %991 = vmatprep.subr.mxu0 0.0
        %992 = vmatpush1.msra.mxu0 0.0
        %993 = vmatprep.subr.mxu0 0.0
        %994 = vmatpush1.msra.mxu0 0.0
        %995 = vmatprep.subr.mxu0 0.0
        %996 = vmatpush1.msra.mxu0 0.0
        %997 = vmatprep.subr.mxu0 0.0
        %998 = vmatpush1.msra.mxu0 0.0
        %999 = vmatprep.subr.mxu0 0.0
        %1000 = vmatpush1.msra.mxu0 0.0
        %1001 = vmatprep.subr.mxu0 0.0
        %1002 = vmatpush1.msra.mxu0 0.0
        %1003 = vmatprep.subr.mxu0 0.0
        %1004 = vmatpush1.msra.mxu0 0.0
        %1005 = vmatprep.subr.mxu0 0.0
        %1006 = vmatpush1.msra.mxu0 0.0
        %1007 = vmatprep.subr.mxu0 0.0
        %1008 = vmatpush1.msra.mxu0 0.0
        %1009 = vmatprep.subr.mxu0 0.0
        %1010 = vmatpush1.msra.mxu0 0.0
        %1011 = vmatprep.subr.mxu0 0.0
        %1012 = vmatpush1.msra.mxu0 0.0
        %1013 = vmatprep.subr.mxu0 0.0
        %1014 = vmatpush1.msra.mxu0 0.0
        %1015 = vmatprep.mubr.f32.mxu0 0.0
        %1016 = vmatmul.mubr.f32.gmra.mrb[0].mxu0 %v949
        %v1017 = vpop.f32.mrb[0].mxu0
        %v1018 = vadd.f32 0.0, %v1017
        %v1019 = vpop.f32.mrb[0].mxu0
        %1020 = vdwg.mxu0
        %v1022 = vsel %vm381, %v1018, 0
        %1024 = vmatprep.subr.mxu0 0.0
        %1025 = vmatpush1.msra.mxu0 %v374
        %1026 = vmatprep.subr.mxu0 0.0
        %1027 = vmatpush1.msra.mxu0 %v375
        %1028 = vmatprep.subr.mxu0 0.0
        %1029 = vmatpush1.msra.mxu0 0.0
        %1030 = vmatprep.subr.mxu0 0.0
        %1031 = vmatpush1.msra.mxu0 0.0
        %1032 = vmatprep.subr.mxu0 0.0
        %1033 = vmatpush1.msra.mxu0 0.0
        %1034 = vmatprep.subr.mxu0 0.0
        %1035 = vmatpush1.msra.mxu0 0.0
        %1036 = vmatprep.subr.mxu0 0.0
        %1037 = vmatpush1.msra.mxu0 0.0
        %1038 = vmatprep.subr.mxu0 0.0
        %1039 = vmatpush1.msra.mxu0 0.0
        %1040 = vmatprep.subr.mxu0 0.0
        %1041 = vmatpush1.msra.mxu0 0.0
        %1042 = vmatprep.subr.mxu0 0.0
        %1043 = vmatpush1.msra.mxu0 0.0
        %1044 = vmatprep.subr.mxu0 0.0
        %1045 = vmatpush1.msra.mxu0 0.0
        %1046 = vmatprep.subr.mxu0 0.0
        %1047 = vmatpush1.msra.mxu0 0.0
        %1048 = vmatprep.subr.mxu0 0.0
        %1049 = vmatpush1.msra.mxu0 0.0
        %1050 = vmatprep.subr.mxu0 0.0
        %1051 = vmatpush1.msra.mxu0 0.0
        %1052 = vmatprep.subr.mxu0 0.0
        %1053 = vmatpush1.msra.mxu0 0.0
        %1054 = vmatprep.subr.mxu0 0.0
        %1055 = vmatpush1.msra.mxu0 0.0
        %1056 = vmatprep.subr.mxu0 0.0
        %1057 = vmatpush1.msra.mxu0 0.0
        %1058 = vmatprep.subr.mxu0 0.0
        %1059 = vmatpush1.msra.mxu0 0.0
        %1060 = vmatprep.subr.mxu0 0.0
        %1061 = vmatpush1.msra.mxu0 0.0
        %1062 = vmatprep.subr.mxu0 0.0
        %1063 = vmatpush1.msra.mxu0 0.0
        %1064 = vmatprep.subr.mxu0 0.0
        %1065 = vmatpush1.msra.mxu0 0.0
        %1066 = vmatprep.subr.mxu0 0.0
        %1067 = vmatpush1.msra.mxu0 0.0
        %1068 = vmatprep.subr.mxu0 0.0
        %1069 = vmatpush1.msra.mxu0 0.0
        %1070 = vmatprep.subr.mxu0 0.0
        %1071 = vmatpush1.msra.mxu0 0.0
        %1072 = vmatprep.subr.mxu0 0.0
        %1073 = vmatpush1.msra.mxu0 0.0
        %1074 = vmatprep.subr.mxu0 0.0
        %1075 = vmatpush1.msra.mxu0 0.0
        %1076 = vmatprep.subr.mxu0 0.0
        %1077 = vmatpush1.msra.mxu0 0.0
        %1078 = vmatprep.subr.mxu0 0.0
        %1079 = vmatpush1.msra.mxu0 0.0
        %1080 = vmatprep.subr.mxu0 0.0
        %1081 = vmatpush1.msra.mxu0 0.0
        %1082 = vmatprep.subr.mxu0 0.0
        %1083 = vmatpush1.msra.mxu0 0.0
        %1084 = vmatprep.subr.mxu0 0.0
        %1085 = vmatpush1.msra.mxu0 0.0
        %1086 = vmatprep.subr.mxu0 0.0
        %1087 = vmatpush1.msra.mxu0 0.0
        %1088 = vmatprep.mubr.f32.mxu0 0.0
        %1089 = vmatmul.mubr.f32.gmra.mrb[0].mxu0 %v1022
        %v1090 = vpop.f32.mrb[0].mxu0
        %v1091 = vadd.f32 0.0, %v1090
        %v1092 = vpop.f32.mrb[0].mxu0
        %1093 = vdwg.mxu0
        %v1094 = vadd.f32 %v852, %v1091
        %1095 = vrot.lane.b32.xlu0 %v366, 80
        %v1096 = vpop.permute.xlu0 %1095
        %1097 = vrot.lane.b32.xlu0 %v366, 16
        %v1098 = vpop.permute.xlu0 %1097
        %v1099 = vsel %vm381, %v1096, 0
        %v1101 = vsel %vm381, %v1098, 0
        %1103 = vmatprep.subr.mxu0 0.0
        %1104 = vmatpush1.xpose.msra.mxu0 %v1101
        %1105 = vmatprep.subr.mxu0 0.0
        %1106 = vmatpush1.xpose.msra.mxu0 0.0
        %1107 = vmatprep.subr.mxu0 0.0
        %1108 = vmatpush1.xpose.msra.mxu0 0.0
        %1109 = vmatprep.subr.mxu0 0.0
        %1110 = vmatpush1.xpose.msra.mxu0 0.0
        %1111 = vmatprep.subr.mxu0 0.0
        %1112 = vmatpush1.xpose.msra.mxu0 0.0
        %1113 = vmatprep.subr.mxu0 0.0
        %1114 = vmatpush1.xpose.msra.mxu0 0.0
        %1115 = vmatprep.subr.mxu0 0.0
        %1116 = vmatpush1.xpose.msra.mxu0 0.0
        %1117 = vmatprep.subr.mxu0 0.0
        %1118 = vmatpush1.xpose.msra.mxu0 0.0
        %1119 = vmatprep.subr.mxu0 0.0
        %1120 = vmatpush1.xpose.msra.mxu0 0.0
        %1121 = vmatprep.subr.mxu0 0.0
        %1122 = vmatpush1.xpose.msra.mxu0 0.0
        %1123 = vmatprep.subr.mxu0 0.0
        %1124 = vmatpush1.xpose.msra.mxu0 0.0
        %1125 = vmatprep.subr.mxu0 0.0
        %1126 = vmatpush1.xpose.msra.mxu0 0.0
        %1127 = vmatprep.subr.mxu0 0.0
        %1128 = vmatpush1.xpose.msra.mxu0 0.0
        %1129 = vmatprep.subr.mxu0 0.0
        %1130 = vmatpush1.xpose.msra.mxu0 0.0
        %1131 = vmatprep.subr.mxu0 0.0
        %1132 = vmatpush1.xpose.msra.mxu0 0.0
        %1133 = vmatprep.subr.mxu0 0.0
        %1134 = vmatpush1.xpose.msra.mxu0 0.0
        %1135 = vmatprep.subr.mxu0 0.0
        %1136 = vmatpush1.xpose.msra.mxu0 0.0
        %1137 = vmatprep.subr.mxu0 0.0
        %1138 = vmatpush1.xpose.msra.mxu0 0.0
        %1139 = vmatprep.subr.mxu0 0.0
        %1140 = vmatpush1.xpose.msra.mxu0 0.0
        %1141 = vmatprep.subr.mxu0 0.0
        %1142 = vmatpush1.xpose.msra.mxu0 0.0
        %1143 = vmatprep.subr.mxu0 0.0
        %1144 = vmatpush1.xpose.msra.mxu0 0.0
        %1145 = vmatprep.subr.mxu0 0.0
        %1146 = vmatpush1.xpose.msra.mxu0 0.0
        %1147 = vmatprep.subr.mxu0 0.0
        %1148 = vmatpush1.xpose.msra.mxu0 0.0
        %1149 = vmatprep.subr.mxu0 0.0
        %1150 = vmatpush1.xpose.msra.mxu0 0.0
        %1151 = vmatprep.subr.mxu0 0.0
        %1152 = vmatpush1.xpose.msra.mxu0 0.0
        %1153 = vmatprep.subr.mxu0 0.0
        %1154 = vmatpush1.xpose.msra.mxu0 0.0
        %1155 = vmatprep.subr.mxu0 0.0
        %1156 = vmatpush1.xpose.msra.mxu0 0.0
        %1157 = vmatprep.subr.mxu0 0.0
        %1158 = vmatpush1.xpose.msra.mxu0 0.0
        %1159 = vmatprep.subr.mxu0 0.0
        %1160 = vmatpush1.xpose.msra.mxu0 0.0
        %1161 = vmatprep.subr.mxu0 0.0
        %1162 = vmatpush1.xpose.msra.mxu0 0.0
        %1163 = vmatprep.subr.mxu0 0.0
        %1164 = vmatpush1.xpose.msra.mxu0 0.0
        %1165 = vmatprep.subr.mxu0 0.0
        %1166 = vmatpush1.xpose.msra.mxu0 0.0
        %1167 = vmatprep.mubr.f32.mxu0 0.0
        %1168 = vmatmul.mubr.f32.gmra.mrb[0].mxu0 %v1099
        %v1169 = vpop.f32.mrb[0].mxu0
        %v1170 = vadd.f32 0.0, %v1169
        %v1171 = vpop.f32.mrb[0].mxu0
        %1172 = vdwg.mxu0
        %v1173 = vmul.f32 %v1170, 0.35355338
        %v1174 = vsel %vm457, %v1173, -inf
        %1175 = vmax.xlane.f32.xlu0 %v1174
        %v1176 = vpop.xlane.xlu0 %1175
        %v1177 = vsub.f32 %v1173, %v1176
        %v1178 = vmul.f32 %v1177, 1.442695
        %v1179 = vpow.pop %v1178
        %v1180 = vsel %vm457, %v1179, 0.0
        %1181 = vadd.xlane.f32.xlu0 %v1180
        %v1182 = vpop.xlane.xlu0 %1181
        %v1183 = vrcp.pop %v1182
        %v1184 = vmul.f32 %v1179, %v1183
        %1185 = vrot.lane.b32.xlu0 %v368, 80
        %v1186 = vpop.permute.xlu0 %1185
        %v1189 = vsel %vm457, %v1184, 0
        %1191 = vmatprep.subr.mxu0 0.0
        %1192 = vmatpush1.msra.mxu0 %v1186
        %1193 = vmatprep.subr.mxu0 0.0
        %1194 = vmatpush1.msra.mxu0 0.0
        %1195 = vmatprep.subr.mxu0 0.0
        %1196 = vmatpush1.msra.mxu0 0.0
        %1197 = vmatprep.subr.mxu0 0.0
        %1198 = vmatpush1.msra.mxu0 0.0
        %1199 = vmatprep.subr.mxu0 0.0
        %1200 = vmatpush1.msra.mxu0 0.0
        %1201 = vmatprep.subr.mxu0 0.0
        %1202 = vmatpush1.msra.mxu0 0.0
        %1203 = vmatprep.subr.mxu0 0.0
        %1204 = vmatpush1.msra.mxu0 0.0
        %1205 = vmatprep.subr.mxu0 0.0
        %1206 = vmatpush1.msra.mxu0 0.0
        %1207 = vmatprep.subr.mxu0 0.0
        %1208 = vmatpush1.msra.mxu0 0.0
        %1209 = vmatprep.subr.mxu0 0.0
        %1210 = vmatpush1.msra.mxu0 0.0
        %1211 = vmatprep.subr.mxu0 0.0
        %1212 = vmatpush1.msra.mxu0 0.0
        %1213 = vmatprep.subr.mxu0 0.0
        %1214 = vmatpush1.msra.mxu0 0.0
        %1215 = vmatprep.subr.mxu0 0.0
        %1216 = vmatpush1.msra.mxu0 0.0
        %1217 = vmatprep.subr.mxu0 0.0
        %1218 = vmatpush1.msra.mxu0 0.0
        %1219 = vmatprep.subr.mxu0 0.0
        %1220 = vmatpush1.msra.mxu0 0.0
        %1221 = vmatprep.subr.mxu0 0.0
        %1222 = vmatpush1.msra.mxu0 0.0
        %1223 = vmatprep.subr.mxu0 0.0
        %1224 = vmatpush1.msra.mxu0 0.0
        %1225 = vmatprep.subr.mxu0 0.0
        %1226 = vmatpush1.msra.mxu0 0.0
        %1227 = vmatprep.subr.mxu0 0.0
        %1228 = vmatpush1.msra.mxu0 0.0
        %1229 = vmatprep.subr.mxu0 0.0
        %1230 = vmatpush1.msra.mxu0 0.0
        %1231 = vmatprep.subr.mxu0 0.0
        %1232 = vmatpush1.msra.mxu0 0.0
        %1233 = vmatprep.subr.mxu0 0.0
        %1234 = vmatpush1.msra.mxu0 0.0
        %1235 = vmatprep.subr.mxu0 0.0
        %1236 = vmatpush1.msra.mxu0 0.0
        %1237 = vmatprep.subr.mxu0 0.0
        %1238 = vmatpush1.msra.mxu0 0.0
        %1239 = vmatprep.subr.mxu0 0.0
        %1240 = vmatpush1.msra.mxu0 0.0
        %1241 = vmatprep.subr.mxu0 0.0
        %1242 = vmatpush1.msra.mxu0 0.0
        %1243 = vmatprep.subr.mxu0 0.0
        %1244 = vmatpush1.msra.mxu0 0.0
        %1245 = vmatprep.subr.mxu0 0.0
        %1246 = vmatpush1.msra.mxu0 0.0
        %1247 = vmatprep.subr.mxu0 0.0
        %1248 = vmatpush1.msra.mxu0 0.0
        %1249 = vmatprep.subr.mxu0 0.0
        %1250 = vmatpush1.msra.mxu0 0.0
        %1251 = vmatprep.subr.mxu0 0.0
        %1252 = vmatpush1.msra.mxu0 0.0
        %1253 = vmatprep.subr.mxu0 0.0
        %1254 = vmatpush1.msra.mxu0 0.0
        %1255 = vmatprep.mubr.f32.mxu0 0.0
        %1256 = vmatmul.mubr.f32.gmra.mrb[0].mxu0 %v1189
        %v1257 = vpop.f32.mrb[0].mxu0
        %v1258 = vadd.f32 0.0, %v1257
        %v1259 = vpop.f32.mrb[0].mxu0
        %1260 = vdwg.mxu0
        %v1262 = vsel %vm381, %v1258, 0
        %1264 = vmatprep.subr.mxu0 0.0
        %1265 = vmatpush1.msra.mxu0 %v376
        %1266 = vmatprep.subr.mxu0 0.0
        %1267 = vmatpush1.msra.mxu0 %v377
        %1268 = vmatprep.subr.mxu0 0.0
        %1269 = vmatpush1.msra.mxu0 0.0
        %1270 = vmatprep.subr.mxu0 0.0
        %1271 = vmatpush1.msra.mxu0 0.0
        %1272 = vmatprep.subr.mxu0 0.0
        %1273 = vmatpush1.msra.mxu0 0.0
        %1274 = vmatprep.subr.mxu0 0.0
        %1275 = vmatpush1.msra.mxu0 0.0
        %1276 = vmatprep.subr.mxu0 0.0
        %1277 = vmatpush1.msra.mxu0 0.0
        %1278 = vmatprep.subr.mxu0 0.0
        %1279 = vmatpush1.msra.mxu0 0.0
        %1280 = vmatprep.subr.mxu0 0.0
        %1281 = vmatpush1.msra.mxu0 0.0
        %1282 = vmatprep.subr.mxu0 0.0
        %1283 = vmatpush1.msra.mxu0 0.0
        %1284 = vmatprep.subr.mxu0 0.0
        %1285 = vmatpush1.msra.mxu0 0.0
        %1286 = vmatprep.subr.mxu0 0.0
        %1287 = vmatpush1.msra.mxu0 0.0
        %1288 = vmatprep.subr.mxu0 0.0
        %1289 = vmatpush1.msra.mxu0 0.0
        %1290 = vmatprep.subr.mxu0 0.0
        %1291 = vmatpush1.msra.mxu0 0.0
        %1292 = vmatprep.subr.mxu0 0.0
        %1293 = vmatpush1.msra.mxu0 0.0
        %1294 = vmatprep.subr.mxu0 0.0
        %1295 = vmatpush1.msra.mxu0 0.0
        %1296 = vmatprep.subr.mxu0 0.0
        %1297 = vmatpush1.msra.mxu0 0.0
        %1298 = vmatprep.subr.mxu0 0.0
        %1299 = vmatpush1.msra.mxu0 0.0
        %1300 = vmatprep.subr.mxu0 0.0
        %1301 = vmatpush1.msra.mxu0 0.0
        %1302 = vmatprep.subr.mxu0 0.0
        %1303 = vmatpush1.msra.mxu0 0.0
        %1304 = vmatprep.subr.mxu0 0.0
        %1305 = vmatpush1.msra.mxu0 0.0
        %1306 = vmatprep.subr.mxu0 0.0
        %1307 = vmatpush1.msra.mxu0 0.0
        %1308 = vmatprep.subr.mxu0 0.0
        %1309 = vmatpush1.msra.mxu0 0.0
        %1310 = vmatprep.subr.mxu0 0.0
        %1311 = vmatpush1.msra.mxu0 0.0
        %1312 = vmatprep.subr.mxu0 0.0
        %1313 = vmatpush1.msra.mxu0 0.0
        %1314 = vmatprep.subr.mxu0 0.0
        %1315 = vmatpush1.msra.mxu0 0.0
        %1316 = vmatprep.subr.mxu0 0.0
        %1317 = vmatpush1.msra.mxu0 0.0
        %1318 = vmatprep.subr.mxu0 0.0
        %1319 = vmatpush1.msra.mxu0 0.0
        %1320 = vmatprep.subr.mxu0 0.0
        %1321 = vmatpush1.msra.mxu0 0.0
        %1322 = vmatprep.subr.mxu0 0.0
        %1323 = vmatpush1.msra.mxu0 0.0
        %1324 = vmatprep.subr.mxu0 0.0
        %1325 = vmatpush1.msra.mxu0 0.0
        %1326 = vmatprep.subr.mxu0 0.0
        %1327 = vmatpush1.msra.mxu0 0.0
        %1328 = vmatprep.mubr.f32.mxu0 0.0
        %1329 = vmatmul.mubr.f32.gmra.mrb[0].mxu0 %v1262
        %v1330 = vpop.f32.mrb[0].mxu0
        %v1331 = vadd.f32 0.0, %v1330
        %v1332 = vpop.f32.mrb[0].mxu0
        %1333 = vdwg.mxu0
        %v1334 = vadd.f32 %v1094, %v1331
        %v1335 = vld [vmem:[%s4] sm:$0x1]
        %v1337 = vlaneseq
        %v1338 = vshrl.u32 %v1337, 7
        %v1339 = vsub.s32 0, %v1338
        %v1340 = vrot.slane %v1335, %v1339
        %v1342 = vadd.f32 %v1334, %v1340
        %v1343 = vadd.f32 %v1342, %v274
        %v1344 = vsel %vm295, %v1343, 0.0
        %1345 = vadd.xlane.f32.xlu0 %v1344
        %v1346 = vpop.xlane.xlu0 %1345
        %v1347 = vrcp.pop 32.0
        %v1348 = vmul.f32 %v1346, %v1347
        %v1349 = vmul.f32 %v1343, %v1343
        %v1350 = vsel %vm295, %v1349, 0.0
        %1351 = vadd.xlane.f32.xlu0 %v1350
        %v1352 = vpop.xlane.xlu0 %1351
        %v1353 = vmul.f32 %v1352, %v1347
        %v1354 = vmul.f32 %v1348, %v1348
        %v1355 = vsub.f32 %v1353, %v1354
        %v1356 = vsub.f32 %v1343, %v1348
        %v1357 = vadd.f32 %v1355, 1e-05
        %v1358 = vrsqrt.pop %v1357
        %v1359 = vmul.f32 %v1356, %v1358
        %v1360 = vld [vmem:[%s5] sm:$0x1]
        %v1362 = vlaneseq
        %v1363 = vshrl.u32 %v1362, 7
        %v1364 = vsub.s32 0, %v1363
        %v1365 = vrot.slane %v1360, %v1364
        %v1367 = vmul.f32 %v1359, %v1365
        %v1368 = vld [vmem:[%s6] sm:$0x1]
        %v1370 = vlaneseq
        %v1371 = vshrl.u32 %v1370, 7
        %v1372 = vsub.s32 0, %v1371
        %v1373 = vrot.slane %v1368, %v1372
        %v1375 = vadd.f32 %v1367, %v1373
        %1376 = vst.msk [vmem:[%s269] sm:$0xff] %vm295, %v1375
        %s1377 = sand.u32 %s181, 1
        %s1378 = scalar_lea.sflag [#allocation3], %s1377
        %s1379 = sand.u32 %s181, 1
        %s1380 = smul.addr %s1379, 8
        %s1381 = scalar_lea.vmem [#allocation2], %s1380
        // Predicated region
        $region49: #{tpu_custom_call.1} parent=47 // pred_check
          %p1382 = pneg %p191
        $region50: #{tpu_custom_call.1} parent=47 // pred_check_branch
          %1384 = sbr.rel (%p1382) target = $region52
        $region51: #{tpu_custom_call.1} parent=47 // pred_region
          %s1386 = ssub.s32 128, 128
          %1387 = vsyncadd %s1378, %s1386
          %s1388 = smul.addr %s21, 128
          %s1389 = scalar_lea.hbm %s7, %s1388
          %s1391 = sshll.u32 %s1381, 4
          %s1392 = int_to_ptr.vmem [resolvable:$true] %s1391
          %1394 = dma.vmem_to_hbm [thread:$0]  %s1392, 128, %s1389, %s1378
        $region52: #{tpu_custom_call.1} parent=47 // pred_fallthru
          _
      $region48: #{tpu_custom_call.1} parent=5 // pred_fallthru
        _
      %p1395 = scmp.le.s32.totalorder 2, %s16
      // Predicated region
      $region53: #{tpu_custom_call.1} parent=5 // pred_check
        %p1396 = pneg %p1395
      $region54: #{tpu_custom_call.1} parent=5 // pred_check_branch
        %1398 = sbr.rel (%p1396) target = $region56
      $region55: #{tpu_custom_call.1} parent=5 // pred_region
        %s1399 = ssub.s32 %s16, 2
        // Predicated region
        $region57: #{tpu_custom_call.1} parent=55 // pred_check
          %p1400 = pneg %p197
        $region58: #{tpu_custom_call.1} parent=55 // pred_check_branch
          %1402 = sbr.rel (%p1400) target = $region60
        $region59: #{tpu_custom_call.1} parent=55 // pred_region
          %s1403 = sand.u32 %s182, 1
          %s1404 = scalar_lea.sflag [#allocation3], %s1403
          %s1405 = sand.u32 %s182, 1
          %s1406 = smul.addr %s1405, 8
          %s1407 = scalar_lea.vmem [#allocation2], %s1406
          %1408 = dma.done %s1404, 128
        $region60: #{tpu_custom_call.1} parent=55 // pred_fallthru
          _
      $region56: #{tpu_custom_call.1} parent=5 // pred_fallthru
        _
    $region6: #{tpu_custom_call.1} parent=1 // loop_footer
      %s20 = sadd.s32 1, %s16
    $region7: #{tpu_custom_call.1} parent=1 // loop_footer_branch
      %15 = sbr.rel target = $region3
    $region8: #{tpu_custom_call.1} parent=1 // loop_exit
      _
    %1409 = vsyncpa [#allocation3], 1
    %s1410 = scalar_lea.sflag [#allocation3], 1
    %1411 = vsyncpa %s1410, 1

</llo_original>
